<compile_context>
chip_gen: v7x
topology: tpu7x:2x2x1
jax: 0.10.0
libtpu: 0.0.40
codegen_flags: <defaults>
</compile_context>

<pallas_src>
import functools

import jax
import jax.numpy as jnp
import numpy as np
from jax import lax
from jax.experimental import pallas as pl
from jax.experimental.pallas import tpu as pltpu

# 3x3 tap offsets, row-major: t = (dh+1)*3 + (dw+1).  This order must match
# the weight transpose in `resblock_pallas` and the mask table in `_tap_masks`.
_TAPS = tuple((dh, dw) for dh in (-1, 0, 1) for dw in (-1, 0, 1))


def _tap_masks(height, width, channels):
    """(9, C, H*W) f32: 1 where the shifted source pixel lies inside the image
    (implements Conv2d(padding=1) zero padding and kills roll wrap-around).
    Pre-broadcast over C in the wrapper so the kernel's tap loop does a plain
    VMEM load instead of re-emitting a broadcast per tap."""
    hh, ww = np.meshgrid(np.arange(height), np.arange(width), indexing="ij")
    m = np.zeros((9, height * width), np.float32)
    for t, (dh, dw) in enumerate(_TAPS):
        valid = ((hh + dh >= 0) & (hh + dh < height)
                 & (ww + dw >= 0) & (ww + dw < width))
        m[t] = valid.reshape(-1).astype(np.float32)
    m = np.broadcast_to(m[:, None, :], (9, channels, height * width))
    return jnp.asarray(m, dtype=jnp.float32)


def _resblock_kernel(x_ref, w1_ref, b1_ref, w2_ref, b2_ref, mask_ref, o_ref,
                     *, width):
    # x_ref    : (nb, C, HW) f32   inputs, spatial flattened on lanes
    # w1_ref   : (9, C, C)   bf16  conv1 weights, one (Cout, Cin) block per tap
    # b1_ref   : (C, 1)      f32
    # w2_ref   : (9, C, C)   bf16  conv2 weights
    # b2_ref   : (C, 1)      f32
    # mask_ref : (9, C, HW)  f32   per-tap border masks (pre-broadcast over C)
    # o_ref    : (nb, C, HW) f32   output (flattened NCHW)
    nb, C, HW = x_ref.shape

    def conv3x3(src_f32, w_ref, b_ref):
        # src_f32: (C, HW) f32.  For tap (dh, dw) the value needed at flat
        # position p = h*W + w is src[:, p + dh*W + dw]; a circular lane roll
        # provides it and the mask zeroes every lane whose source pixel falls
        # outside the image (which also removes the roll's wrap-around).
        # Accumulate the 9 tap matmuls in f32 vregs, seeded with the bias,
        # so there is no separate bias add and no patches scratch.
        acc = jnp.broadcast_to(b_ref[...], (C, HW))
        for t, (dh, dw) in enumerate(_TAPS):
            shift = dh * width + dw
            if shift == 0:
                # center tap: no roll, mask is all-ones -> skip both
                patch = src_f32.astype(jnp.bfloat16)
            else:
                # rolled[:, p] == src[:, (p + shift) % HW]
                rolled = pltpu.roll(src_f32, shift=(-shift) % HW, axis=1)
                patch = (rolled * mask_ref[t]).astype(jnp.bfloat16)
            acc = acc + jnp.dot(w_ref[t], patch,
                                preferred_element_type=jnp.float32)
        return acc                                             # (C, HW) f32

    def body(i, carry):
        a1 = conv3x3(x_ref[i], w1_ref, b1_ref)                 # conv1 + bias
        mid = jnp.maximum(a1, 0.0)                             # ReLU (vregs)
        a2 = conv3x3(mid, w2_ref, b2_ref)                      # conv2 + bias
        # Residual: reload x_ref[i] rather than keeping it live across both
        # convs; the result is stored per image (never a (C, nb*HW) value).
        o_ref[i] = x_ref[i] + a2
        return carry

    lax.fori_loop(0, nb, body, None, unroll=True)


def _pick_batch_block(n):
    """Images per grid step.  Keep >= 2 grid steps so both v7x TensorCores get
    work (harmless on single-core v5e/v6e); cap at 8 images/step, which is
    plenty to amortize the ~0.35us per-step overhead."""
    for nb in (8, 4, 2, 1):
        if n % nb == 0 and n // nb >= 2:
            return nb
    return 1


def resblock_pallas(x_nchw, w1_oihw, b1, w2_oihw, b2, *, batch_block=None):
    """ResBlock forward: conv3x3(pad=1) -> ReLU -> conv3x3(pad=1) -> + x.

    x_nchw: (N, C, H, W); conv weights in PyTorch OIHW layout.  Returns NCHW.
    Fastest when H*W is a multiple of 128 (lane-dense); other sizes are still
    correct (block == full array) but hit masked stores — pad spatially in the
    caller if that matters.
    """
    N, C, H, W = x_nchw.shape
    Cout = w1_oihw.shape[0]
    assert Cout == C, "residual add requires out_planes == in_planes"
    HW = H * W
    nb = batch_block if batch_block is not None else _pick_batch_block(N)
    assert N % nb == 0

    # (N, C, H, W) -> (N, C, H*W): metadata-only reshape (NCHW is contiguous).
    x_flat = x_nchw.reshape(N, C, HW).astype(jnp.float32)

    # OIHW -> (kh, kw, O, I) -> (9, O, I): tap-major, matching _TAPS order
    # (t = kh*3 + kw, (dh, dw) = (kh-1, kw-1)).  bf16 operands for the MXU;
    # accumulation stays f32 via preferred_element_type.
    w1e = jnp.transpose(w1_oihw, (2, 3, 0, 1)).reshape(9, Cout, C)
    w2e = jnp.transpose(w2_oihw, (2, 3, 0, 1)).reshape(9, Cout, Cout)
    w1e = w1e.astype(jnp.bfloat16)
    w2e = w2e.astype(jnp.bfloat16)
    b1c = b1.reshape(Cout, 1).astype(jnp.float32)
    b2c = b2.reshape(Cout, 1).astype(jnp.float32)
    masks = _tap_masks(H, W, C)

    kernel = functools.partial(_resblock_kernel, width=W)

    # VMEM budget per grid step (no scratch buffers at all):
    #   double-buffered in+out blocks: 2*2*nb*C*HW*4 B  (nb=8 -> ~2 MiB)
    #   masks 9*C*HW*4 B (~0.3 MiB) + weights/bias (~0.04 MiB)
    # -> far below the 32 MiB default scoped limit and v7x's 64 MiB physical
    #    VMEM, so the default vmem limit is left untouched.
    out_flat = pl.pallas_call(
        kernel,
        out_shape=jax.ShapeDtypeStruct((N, C, HW), jnp.float32),
        grid_spec=pltpu.PrefetchScalarGridSpec(
            num_scalar_prefetch=0,
            grid=(N // nb,),
            in_specs=[
                pl.BlockSpec((nb, C, HW), lambda n: (n, 0, 0)),
                pl.BlockSpec((9, Cout, C), lambda n: (0, 0, 0)),
                pl.BlockSpec((Cout, 1), lambda n: (0, 0)),
                pl.BlockSpec((9, Cout, Cout), lambda n: (0, 0, 0)),
                pl.BlockSpec((Cout, 1), lambda n: (0, 0)),
                pl.BlockSpec((9, C, HW), lambda n: (0, 0, 0)),
            ],
            out_specs=pl.BlockSpec((nb, C, HW), lambda n: (n, 0, 0)),
        ),
        compiler_params=pltpu.CompilerParams(
            dimension_semantics=("parallel",)),
    )(x_flat, w1e, b1c, w2e, b2c, masks)

    # (N, C, H*W) -> (N, C, H, W): metadata-only reshape.
    return out_flat.reshape(N, C, H, W)


def _reference(x_nchw, w1, b1, w2, b2):
    """Plain-JAX f32 reference matching nn.Conv2d semantics."""
    dn = jax.lax.conv_dimension_numbers(x_nchw.shape, w1.shape,
                                        ("NCHW", "OIHW", "NCHW"))
    y = jax.lax.conv_general_dilated(x_nchw, w1, (1, 1), ((1, 1), (1, 1)),
                                     dimension_numbers=dn)
    y = y + b1.reshape(1, -1, 1, 1)
    y = jnp.maximum(y, 0.0)
    y = jax.lax.conv_general_dilated(y, w2, (1, 1), ((1, 1), (1, 1)),
                                     dimension_numbers=dn)
    y = y + b2.reshape(1, -1, 1, 1)
    return x_nchw + y


if __name__ == "__main__":
    key = jax.random.PRNGKey(0)
    N, C, H, W = 2, 32, 16, 16            # in_planes = out_planes = 32
    k_x, k_w1, k_b1, k_w2, k_b2 = jax.random.split(key, 5)

    x = jax.random.normal(k_x, (N, C, H, W), dtype=jnp.float32)
    w1 = jax.random.normal(k_w1, (C, C, 3, 3), dtype=jnp.float32) * 0.05
    b1 = jax.random.normal(k_b1, (C,), dtype=jnp.float32) * 0.05
    w2 = jax.random.normal(k_w2, (C, C, 3, 3), dtype=jnp.float32) * 0.05
    b2 = jax.random.normal(k_b2, (C,), dtype=jnp.float32) * 0.05

    out = jax.block_until_ready(resblock_pallas(x, w1, b1, w2, b2))
    ref = jax.block_until_ready(_reference(x, w1, b1, w2, b2))

    assert out.shape == (N, C, H, W)
    max_err = float(jnp.max(jnp.abs(out - ref)))
    # bf16 MXU operands with f32 accumulation -> small numerical difference
    # vs. the pure-f32 reference.
    assert jnp.allclose(out, ref, atol=5e-2, rtol=5e-2), (
        f"mismatch vs reference (max abs err {max_err})")

    print("KERNEL_OK")
</pallas_src>

<mosaic_0001>
module attributes {stable_mosaic.version = 11 : i64} {
  func.func @_resblock_kernel(%arg0: i32, %arg1: memref<1x32x256xf32, #tpu.memory_space<vmem>>, %arg2: memref<9x32x32xbf16, #tpu.memory_space<vmem>>, %arg3: memref<32x1xf32, #tpu.memory_space<vmem>>, %arg4: memref<9x32x32xbf16, #tpu.memory_space<vmem>>, %arg5: memref<32x1xf32, #tpu.memory_space<vmem>>, %arg6: memref<9x32x256xf32, #tpu.memory_space<vmem>>, %arg7: memref<1x32x256xf32, #tpu.memory_space<vmem>>) attributes {dimension_semantics = [#tpu.dimension_semantics<parallel>], iteration_bounds = array<i64: 2>, scalar_prefetch = 0 : i64, scratch_operands = 0 : i64, tpu.core_type = #tpu.core_type<tc>, window_params = [{transform_indices = @transform_0, window_bounds = array<i64: 1, 32, 256>}, {pipeline_mode = #tpu.pipeline_mode<synchronous>, transform_indices = @transform_1, window_bounds = array<i64: 9, 32, 32>}, {pipeline_mode = #tpu.pipeline_mode<synchronous>, transform_indices = @transform_2, window_bounds = array<i64: 32, 1>}, {pipeline_mode = #tpu.pipeline_mode<synchronous>, transform_indices = @transform_3, window_bounds = array<i64: 9, 32, 32>}, {pipeline_mode = #tpu.pipeline_mode<synchronous>, transform_indices = @transform_4, window_bounds = array<i64: 32, 1>}, {pipeline_mode = #tpu.pipeline_mode<synchronous>, transform_indices = @transform_5, window_bounds = array<i64: 9, 32, 256>}, {transform_indices = @transform_6, window_bounds = array<i64: 1, 32, 256>}]} {
    %c0_i32 = arith.constant 0 : i32
    %0 = arith.index_cast %c0_i32 : i32 to index
    %c0 = arith.constant 0 : index
    %c0_0 = arith.constant 0 : index
    %1 = vector.load %arg1[%0, %c0, %c0_0] : memref<1x32x256xf32, #tpu.memory_space<vmem>>, vector<1x32x256xf32>
    %2 = vector.shape_cast %1 : vector<1x32x256xf32> to vector<32x256xf32>
    %c0_1 = arith.constant 0 : index
    %c0_2 = arith.constant 0 : index
    %3 = vector.load %arg3[%c0_1, %c0_2] : memref<32x1xf32, #tpu.memory_space<vmem>>, vector<32x1xf32>
    %4 = vector.shape_cast %3 : vector<32x1xf32> to vector<32x1xf32>
    %5 = vector.broadcast %4 : vector<32x1xf32> to vector<32x256xf32>
    %c17_i32 = arith.constant 17 : i32
    %6 = tpu.dynamic_rotate %2 by %c17_i32 dim 1 : vector<32x256xf32>, i32 -> vector<32x256xf32>
    %c0_3 = arith.constant 0 : index
    %c0_4 = arith.constant 0 : index
    %c0_5 = arith.constant 0 : index
    %7 = vector.load %arg6[%c0_3, %c0_4, %c0_5] : memref<9x32x256xf32, #tpu.memory_space<vmem>>, vector<1x32x256xf32>
    %8 = vector.shape_cast %7 : vector<1x32x256xf32> to vector<32x256xf32>
    %9 = arith.mulf %6, %8 : vector<32x256xf32>
    %10 = arith.truncf %9 : vector<32x256xf32> to vector<32x256xbf16>
    %c0_6 = arith.constant 0 : index
    %c0_7 = arith.constant 0 : index
    %c0_8 = arith.constant 0 : index
    %11 = vector.load %arg2[%c0_6, %c0_7, %c0_8] : memref<9x32x32xbf16, #tpu.memory_space<vmem>>, vector<1x32x32xbf16>
    %12 = vector.shape_cast %11 : vector<1x32x32xbf16> to vector<32x32xbf16>
    %cst = arith.constant dense<0.000000e+00> : vector<32x256xf32>
    %13 = tpu.matmul %12, %10, %cst {dimension_numbers = #tpu.dot_dimension_numbers<[1], [0], [0], [1], [0, 0, 1, 1], [], []>} : vector<32x32xbf16>, vector<32x256xbf16>, vector<32x256xf32> -> vector<32x256xf32>
    %14 = arith.addf %5, %13 : vector<32x256xf32>
    %c16_i32 = arith.constant 16 : i32
    %15 = tpu.dynamic_rotate %2 by %c16_i32 dim 1 : vector<32x256xf32>, i32 -> vector<32x256xf32>
    %c1 = arith.constant 1 : index
    %c0_9 = arith.constant 0 : index
    %c0_10 = arith.constant 0 : index
    %16 = vector.load %arg6[%c1, %c0_9, %c0_10] : memref<9x32x256xf32, #tpu.memory_space<vmem>>, vector<1x32x256xf32>
    %17 = vector.shape_cast %16 : vector<1x32x256xf32> to vector<32x256xf32>
    %18 = arith.mulf %15, %17 : vector<32x256xf32>
    %19 = arith.truncf %18 : vector<32x256xf32> to vector<32x256xbf16>
    %c1_11 = arith.constant 1 : index
    %c0_12 = arith.constant 0 : index
    %c0_13 = arith.constant 0 : index
    %20 = vector.load %arg2[%c1_11, %c0_12, %c0_13] : memref<9x32x32xbf16, #tpu.memory_space<vmem>>, vector<1x32x32xbf16>
    %21 = vector.shape_cast %20 : vector<1x32x32xbf16> to vector<32x32xbf16>
    %cst_14 = arith.constant dense<0.000000e+00> : vector<32x256xf32>
    %22 = tpu.matmul %21, %19, %cst_14 {dimension_numbers = #tpu.dot_dimension_numbers<[1], [0], [0], [1], [0, 0, 1, 1], [], []>} : vector<32x32xbf16>, vector<32x256xbf16>, vector<32x256xf32> -> vector<32x256xf32>
    %23 = arith.addf %14, %22 : vector<32x256xf32>
    %c15_i32 = arith.constant 15 : i32
    %24 = tpu.dynamic_rotate %2 by %c15_i32 dim 1 : vector<32x256xf32>, i32 -> vector<32x256xf32>
    %c2 = arith.constant 2 : index
    %c0_15 = arith.constant 0 : index
    %c0_16 = arith.constant 0 : index
    %25 = vector.load %arg6[%c2, %c0_15, %c0_16] : memref<9x32x256xf32, #tpu.memory_space<vmem>>, vector<1x32x256xf32>
    %26 = vector.shape_cast %25 : vector<1x32x256xf32> to vector<32x256xf32>
    %27 = arith.mulf %24, %26 : vector<32x256xf32>
    %28 = arith.truncf %27 : vector<32x256xf32> to vector<32x256xbf16>
    %c2_17 = arith.constant 2 : index
    %c0_18 = arith.constant 0 : index
    %c0_19 = arith.constant 0 : index
    %29 = vector.load %arg2[%c2_17, %c0_18, %c0_19] : memref<9x32x32xbf16, #tpu.memory_space<vmem>>, vector<1x32x32xbf16>
    %30 = vector.shape_cast %29 : vector<1x32x32xbf16> to vector<32x32xbf16>
    %cst_20 = arith.constant dense<0.000000e+00> : vector<32x256xf32>
    %31 = tpu.matmul %30, %28, %cst_20 {dimension_numbers = #tpu.dot_dimension_numbers<[1], [0], [0], [1], [0, 0, 1, 1], [], []>} : vector<32x32xbf16>, vector<32x256xbf16>, vector<32x256xf32> -> vector<32x256xf32>
    %32 = arith.addf %23, %31 : vector<32x256xf32>
    %c1_i32 = arith.constant 1 : i32
    %33 = tpu.dynamic_rotate %2 by %c1_i32 dim 1 : vector<32x256xf32>, i32 -> vector<32x256xf32>
    %c3 = arith.constant 3 : index
    %c0_21 = arith.constant 0 : index
    %c0_22 = arith.constant 0 : index
    %34 = vector.load %arg6[%c3, %c0_21, %c0_22] : memref<9x32x256xf32, #tpu.memory_space<vmem>>, vector<1x32x256xf32>
    %35 = vector.shape_cast %34 : vector<1x32x256xf32> to vector<32x256xf32>
    %36 = arith.mulf %33, %35 : vector<32x256xf32>
    %37 = arith.truncf %36 : vector<32x256xf32> to vector<32x256xbf16>
    %c3_23 = arith.constant 3 : index
    %c0_24 = arith.constant 0 : index
    %c0_25 = arith.constant 0 : index
    %38 = vector.load %arg2[%c3_23, %c0_24, %c0_25] : memref<9x32x32xbf16, #tpu.memory_space<vmem>>, vector<1x32x32xbf16>
    %39 = vector.shape_cast %38 : vector<1x32x32xbf16> to vector<32x32xbf16>
    %cst_26 = arith.constant dense<0.000000e+00> : vector<32x256xf32>
    %40 = tpu.matmul %39, %37, %cst_26 {dimension_numbers = #tpu.dot_dimension_numbers<[1], [0], [0], [1], [0, 0, 1, 1], [], []>} : vector<32x32xbf16>, vector<32x256xbf16>, vector<32x256xf32> -> vector<32x256xf32>
    %41 = arith.addf %32, %40 : vector<32x256xf32>
    %42 = arith.truncf %2 : vector<32x256xf32> to vector<32x256xbf16>
    %c4 = arith.constant 4 : index
    %c0_27 = arith.constant 0 : index
    %c0_28 = arith.constant 0 : index
    %43 = vector.load %arg2[%c4, %c0_27, %c0_28] : memref<9x32x32xbf16, #tpu.memory_space<vmem>>, vector<1x32x32xbf16>
    %44 = vector.shape_cast %43 : vector<1x32x32xbf16> to vector<32x32xbf16>
    %cst_29 = arith.constant dense<0.000000e+00> : vector<32x256xf32>
    %45 = tpu.matmul %44, %42, %cst_29 {dimension_numbers = #tpu.dot_dimension_numbers<[1], [0], [0], [1], [0, 0, 1, 1], [], []>} : vector<32x32xbf16>, vector<32x256xbf16>, vector<32x256xf32> -> vector<32x256xf32>
    %46 = arith.addf %41, %45 : vector<32x256xf32>
    %c255_i32 = arith.constant 255 : i32
    %47 = tpu.dynamic_rotate %2 by %c255_i32 dim 1 : vector<32x256xf32>, i32 -> vector<32x256xf32>
    %c5 = arith.constant 5 : index
    %c0_30 = arith.constant 0 : index
    %c0_31 = arith.constant 0 : index
    %48 = vector.load %arg6[%c5, %c0_30, %c0_31] : memref<9x32x256xf32, #tpu.memory_space<vmem>>, vector<1x32x256xf32>
    %49 = vector.shape_cast %48 : vector<1x32x256xf32> to vector<32x256xf32>
    %50 = arith.mulf %47, %49 : vector<32x256xf32>
    %51 = arith.truncf %50 : vector<32x256xf32> to vector<32x256xbf16>
    %c5_32 = arith.constant 5 : index
    %c0_33 = arith.constant 0 : index
    %c0_34 = arith.constant 0 : index
    %52 = vector.load %arg2[%c5_32, %c0_33, %c0_34] : memref<9x32x32xbf16, #tpu.memory_space<vmem>>, vector<1x32x32xbf16>
    %53 = vector.shape_cast %52 : vector<1x32x32xbf16> to vector<32x32xbf16>
    %cst_35 = arith.constant dense<0.000000e+00> : vector<32x256xf32>
    %54 = tpu.matmul %53, %51, %cst_35 {dimension_numbers = #tpu.dot_dimension_numbers<[1], [0], [0], [1], [0, 0, 1, 1], [], []>} : vector<32x32xbf16>, vector<32x256xbf16>, vector<32x256xf32> -> vector<32x256xf32>
    %55 = arith.addf %46, %54 : vector<32x256xf32>
    %c241_i32 = arith.constant 241 : i32
    %56 = tpu.dynamic_rotate %2 by %c241_i32 dim 1 : vector<32x256xf32>, i32 -> vector<32x256xf32>
    %c6 = arith.constant 6 : index
    %c0_36 = arith.constant 0 : index
    %c0_37 = arith.constant 0 : index
    %57 = vector.load %arg6[%c6, %c0_36, %c0_37] : memref<9x32x256xf32, #tpu.memory_space<vmem>>, vector<1x32x256xf32>
    %58 = vector.shape_cast %57 : vector<1x32x256xf32> to vector<32x256xf32>
    %59 = arith.mulf %56, %58 : vector<32x256xf32>
    %60 = arith.truncf %59 : vector<32x256xf32> to vector<32x256xbf16>
    %c6_38 = arith.constant 6 : index
    %c0_39 = arith.constant 0 : index
    %c0_40 = arith.constant 0 : index
    %61 = vector.load %arg2[%c6_38, %c0_39, %c0_40] : memref<9x32x32xbf16, #tpu.memory_space<vmem>>, vector<1x32x32xbf16>
    %62 = vector.shape_cast %61 : vector<1x32x32xbf16> to vector<32x32xbf16>
    %cst_41 = arith.constant dense<0.000000e+00> : vector<32x256xf32>
    %63 = tpu.matmul %62, %60, %cst_41 {dimension_numbers = #tpu.dot_dimension_numbers<[1], [0], [0], [1], [0, 0, 1, 1], [], []>} : vector<32x32xbf16>, vector<32x256xbf16>, vector<32x256xf32> -> vector<32x256xf32>
    %64 = arith.addf %55, %63 : vector<32x256xf32>
    %c240_i32 = arith.constant 240 : i32
    %65 = tpu.dynamic_rotate %2 by %c240_i32 dim 1 : vector<32x256xf32>, i32 -> vector<32x256xf32>
    %c7 = arith.constant 7 : index
    %c0_42 = arith.constant 0 : index
    %c0_43 = arith.constant 0 : index
    %66 = vector.load %arg6[%c7, %c0_42, %c0_43] : memref<9x32x256xf32, #tpu.memory_space<vmem>>, vector<1x32x256xf32>
    %67 = vector.shape_cast %66 : vector<1x32x256xf32> to vector<32x256xf32>
    %68 = arith.mulf %65, %67 : vector<32x256xf32>
    %69 = arith.truncf %68 : vector<32x256xf32> to vector<32x256xbf16>
    %c7_44 = arith.constant 7 : index
    %c0_45 = arith.constant 0 : index
    %c0_46 = arith.constant 0 : index
    %70 = vector.load %arg2[%c7_44, %c0_45, %c0_46] : memref<9x32x32xbf16, #tpu.memory_space<vmem>>, vector<1x32x32xbf16>
    %71 = vector.shape_cast %70 : vector<1x32x32xbf16> to vector<32x32xbf16>
    %cst_47 = arith.constant dense<0.000000e+00> : vector<32x256xf32>
    %72 = tpu.matmul %71, %69, %cst_47 {dimension_numbers = #tpu.dot_dimension_numbers<[1], [0], [0], [1], [0, 0, 1, 1], [], []>} : vector<32x32xbf16>, vector<32x256xbf16>, vector<32x256xf32> -> vector<32x256xf32>
    %73 = arith.addf %64, %72 : vector<32x256xf32>
    %c239_i32 = arith.constant 239 : i32
    %74 = tpu.dynamic_rotate %2 by %c239_i32 dim 1 : vector<32x256xf32>, i32 -> vector<32x256xf32>
    %c8 = arith.constant 8 : index
    %c0_48 = arith.constant 0 : index
    %c0_49 = arith.constant 0 : index
    %75 = vector.load %arg6[%c8, %c0_48, %c0_49] : memref<9x32x256xf32, #tpu.memory_space<vmem>>, vector<1x32x256xf32>
    %76 = vector.shape_cast %75 : vector<1x32x256xf32> to vector<32x256xf32>
    %77 = arith.mulf %74, %76 : vector<32x256xf32>
    %78 = arith.truncf %77 : vector<32x256xf32> to vector<32x256xbf16>
    %c8_50 = arith.constant 8 : index
    %c0_51 = arith.constant 0 : index
    %c0_52 = arith.constant 0 : index
    %79 = vector.load %arg2[%c8_50, %c0_51, %c0_52] : memref<9x32x32xbf16, #tpu.memory_space<vmem>>, vector<1x32x32xbf16>
    %80 = vector.shape_cast %79 : vector<1x32x32xbf16> to vector<32x32xbf16>
    %cst_53 = arith.constant dense<0.000000e+00> : vector<32x256xf32>
    %81 = tpu.matmul %80, %78, %cst_53 {dimension_numbers = #tpu.dot_dimension_numbers<[1], [0], [0], [1], [0, 0, 1, 1], [], []>} : vector<32x32xbf16>, vector<32x256xbf16>, vector<32x256xf32> -> vector<32x256xf32>
    %82 = arith.addf %73, %81 : vector<32x256xf32>
    %cst_54 = arith.constant 0.000000e+00 : f32
    %83 = vector.broadcast %cst_54 : f32 to vector<32x256xf32>
    %84 = arith.maximumf %82, %83 : vector<32x256xf32>
    %c0_55 = arith.constant 0 : index
    %c0_56 = arith.constant 0 : index
    %85 = vector.load %arg5[%c0_55, %c0_56] : memref<32x1xf32, #tpu.memory_space<vmem>>, vector<32x1xf32>
    %86 = vector.shape_cast %85 : vector<32x1xf32> to vector<32x1xf32>
    %87 = vector.broadcast %86 : vector<32x1xf32> to vector<32x256xf32>
    %c17_i32_57 = arith.constant 17 : i32
    %88 = tpu.dynamic_rotate %84 by %c17_i32_57 dim 1 : vector<32x256xf32>, i32 -> vector<32x256xf32>
    %c0_58 = arith.constant 0 : index
    %c0_59 = arith.constant 0 : index
    %c0_60 = arith.constant 0 : index
    %89 = vector.load %arg6[%c0_58, %c0_59, %c0_60] : memref<9x32x256xf32, #tpu.memory_space<vmem>>, vector<1x32x256xf32>
    %90 = vector.shape_cast %89 : vector<1x32x256xf32> to vector<32x256xf32>
    %91 = arith.mulf %88, %90 : vector<32x256xf32>
    %92 = arith.truncf %91 : vector<32x256xf32> to vector<32x256xbf16>
    %c0_61 = arith.constant 0 : index
    %c0_62 = arith.constant 0 : index
    %c0_63 = arith.constant 0 : index
    %93 = vector.load %arg4[%c0_61, %c0_62, %c0_63] : memref<9x32x32xbf16, #tpu.memory_space<vmem>>, vector<1x32x32xbf16>
    %94 = vector.shape_cast %93 : vector<1x32x32xbf16> to vector<32x32xbf16>
    %cst_64 = arith.constant dense<0.000000e+00> : vector<32x256xf32>
    %95 = tpu.matmul %94, %92, %cst_64 {dimension_numbers = #tpu.dot_dimension_numbers<[1], [0], [0], [1], [0, 0, 1, 1], [], []>} : vector<32x32xbf16>, vector<32x256xbf16>, vector<32x256xf32> -> vector<32x256xf32>
    %96 = arith.addf %87, %95 : vector<32x256xf32>
    %c16_i32_65 = arith.constant 16 : i32
    %97 = tpu.dynamic_rotate %84 by %c16_i32_65 dim 1 : vector<32x256xf32>, i32 -> vector<32x256xf32>
    %c1_66 = arith.constant 1 : index
    %c0_67 = arith.constant 0 : index
    %c0_68 = arith.constant 0 : index
    %98 = vector.load %arg6[%c1_66, %c0_67, %c0_68] : memref<9x32x256xf32, #tpu.memory_space<vmem>>, vector<1x32x256xf32>
    %99 = vector.shape_cast %98 : vector<1x32x256xf32> to vector<32x256xf32>
    %100 = arith.mulf %97, %99 : vector<32x256xf32>
    %101 = arith.truncf %100 : vector<32x256xf32> to vector<32x256xbf16>
    %c1_69 = arith.constant 1 : index
    %c0_70 = arith.constant 0 : index
    %c0_71 = arith.constant 0 : index
    %102 = vector.load %arg4[%c1_69, %c0_70, %c0_71] : memref<9x32x32xbf16, #tpu.memory_space<vmem>>, vector<1x32x32xbf16>
    %103 = vector.shape_cast %102 : vector<1x32x32xbf16> to vector<32x32xbf16>
    %cst_72 = arith.constant dense<0.000000e+00> : vector<32x256xf32>
    %104 = tpu.matmul %103, %101, %cst_72 {dimension_numbers = #tpu.dot_dimension_numbers<[1], [0], [0], [1], [0, 0, 1, 1], [], []>} : vector<32x32xbf16>, vector<32x256xbf16>, vector<32x256xf32> -> vector<32x256xf32>
    %105 = arith.addf %96, %104 : vector<32x256xf32>
    %c15_i32_73 = arith.constant 15 : i32
    %106 = tpu.dynamic_rotate %84 by %c15_i32_73 dim 1 : vector<32x256xf32>, i32 -> vector<32x256xf32>
    %c2_74 = arith.constant 2 : index
    %c0_75 = arith.constant 0 : index
    %c0_76 = arith.constant 0 : index
    %107 = vector.load %arg6[%c2_74, %c0_75, %c0_76] : memref<9x32x256xf32, #tpu.memory_space<vmem>>, vector<1x32x256xf32>
    %108 = vector.shape_cast %107 : vector<1x32x256xf32> to vector<32x256xf32>
    %109 = arith.mulf %106, %108 : vector<32x256xf32>
    %110 = arith.truncf %109 : vector<32x256xf32> to vector<32x256xbf16>
    %c2_77 = arith.constant 2 : index
    %c0_78 = arith.constant 0 : index
    %c0_79 = arith.constant 0 : index
    %111 = vector.load %arg4[%c2_77, %c0_78, %c0_79] : memref<9x32x32xbf16, #tpu.memory_space<vmem>>, vector<1x32x32xbf16>
    %112 = vector.shape_cast %111 : vector<1x32x32xbf16> to vector<32x32xbf16>
    %cst_80 = arith.constant dense<0.000000e+00> : vector<32x256xf32>
    %113 = tpu.matmul %112, %110, %cst_80 {dimension_numbers = #tpu.dot_dimension_numbers<[1], [0], [0], [1], [0, 0, 1, 1], [], []>} : vector<32x32xbf16>, vector<32x256xbf16>, vector<32x256xf32> -> vector<32x256xf32>
    %114 = arith.addf %105, %113 : vector<32x256xf32>
    %c1_i32_81 = arith.constant 1 : i32
    %115 = tpu.dynamic_rotate %84 by %c1_i32_81 dim 1 : vector<32x256xf32>, i32 -> vector<32x256xf32>
    %c3_82 = arith.constant 3 : index
    %c0_83 = arith.constant 0 : index
    %c0_84 = arith.constant 0 : index
    %116 = vector.load %arg6[%c3_82, %c0_83, %c0_84] : memref<9x32x256xf32, #tpu.memory_space<vmem>>, vector<1x32x256xf32>
    %117 = vector.shape_cast %116 : vector<1x32x256xf32> to vector<32x256xf32>
    %118 = arith.mulf %115, %117 : vector<32x256xf32>
    %119 = arith.truncf %118 : vector<32x256xf32> to vector<32x256xbf16>
    %c3_85 = arith.constant 3 : index
    %c0_86 = arith.constant 0 : index
    %c0_87 = arith.constant 0 : index
    %120 = vector.load %arg4[%c3_85, %c0_86, %c0_87] : memref<9x32x32xbf16, #tpu.memory_space<vmem>>, vector<1x32x32xbf16>
    %121 = vector.shape_cast %120 : vector<1x32x32xbf16> to vector<32x32xbf16>
    %cst_88 = arith.constant dense<0.000000e+00> : vector<32x256xf32>
    %122 = tpu.matmul %121, %119, %cst_88 {dimension_numbers = #tpu.dot_dimension_numbers<[1], [0], [0], [1], [0, 0, 1, 1], [], []>} : vector<32x32xbf16>, vector<32x256xbf16>, vector<32x256xf32> -> vector<32x256xf32>
    %123 = arith.addf %114, %122 : vector<32x256xf32>
    %124 = arith.truncf %84 : vector<32x256xf32> to vector<32x256xbf16>
    %c4_89 = arith.constant 4 : index
    %c0_90 = arith.constant 0 : index
    %c0_91 = arith.constant 0 : index
    %125 = vector.load %arg4[%c4_89, %c0_90, %c0_91] : memref<9x32x32xbf16, #tpu.memory_space<vmem>>, vector<1x32x32xbf16>
    %126 = vector.shape_cast %125 : vector<1x32x32xbf16> to vector<32x32xbf16>
    %cst_92 = arith.constant dense<0.000000e+00> : vector<32x256xf32>
    %127 = tpu.matmul %126, %124, %cst_92 {dimension_numbers = #tpu.dot_dimension_numbers<[1], [0], [0], [1], [0, 0, 1, 1], [], []>} : vector<32x32xbf16>, vector<32x256xbf16>, vector<32x256xf32> -> vector<32x256xf32>
    %128 = arith.addf %123, %127 : vector<32x256xf32>
    %c255_i32_93 = arith.constant 255 : i32
    %129 = tpu.dynamic_rotate %84 by %c255_i32_93 dim 1 : vector<32x256xf32>, i32 -> vector<32x256xf32>
    %c5_94 = arith.constant 5 : index
    %c0_95 = arith.constant 0 : index
    %c0_96 = arith.constant 0 : index
    %130 = vector.load %arg6[%c5_94, %c0_95, %c0_96] : memref<9x32x256xf32, #tpu.memory_space<vmem>>, vector<1x32x256xf32>
    %131 = vector.shape_cast %130 : vector<1x32x256xf32> to vector<32x256xf32>
    %132 = arith.mulf %129, %131 : vector<32x256xf32>
    %133 = arith.truncf %132 : vector<32x256xf32> to vector<32x256xbf16>
    %c5_97 = arith.constant 5 : index
    %c0_98 = arith.constant 0 : index
    %c0_99 = arith.constant 0 : index
    %134 = vector.load %arg4[%c5_97, %c0_98, %c0_99] : memref<9x32x32xbf16, #tpu.memory_space<vmem>>, vector<1x32x32xbf16>
    %135 = vector.shape_cast %134 : vector<1x32x32xbf16> to vector<32x32xbf16>
    %cst_100 = arith.constant dense<0.000000e+00> : vector<32x256xf32>
    %136 = tpu.matmul %135, %133, %cst_100 {dimension_numbers = #tpu.dot_dimension_numbers<[1], [0], [0], [1], [0, 0, 1, 1], [], []>} : vector<32x32xbf16>, vector<32x256xbf16>, vector<32x256xf32> -> vector<32x256xf32>
    %137 = arith.addf %128, %136 : vector<32x256xf32>
    %c241_i32_101 = arith.constant 241 : i32
    %138 = tpu.dynamic_rotate %84 by %c241_i32_101 dim 1 : vector<32x256xf32>, i32 -> vector<32x256xf32>
    %c6_102 = arith.constant 6 : index
    %c0_103 = arith.constant 0 : index
    %c0_104 = arith.constant 0 : index
    %139 = vector.load %arg6[%c6_102, %c0_103, %c0_104] : memref<9x32x256xf32, #tpu.memory_space<vmem>>, vector<1x32x256xf32>
    %140 = vector.shape_cast %139 : vector<1x32x256xf32> to vector<32x256xf32>
    %141 = arith.mulf %138, %140 : vector<32x256xf32>
    %142 = arith.truncf %141 : vector<32x256xf32> to vector<32x256xbf16>
    %c6_105 = arith.constant 6 : index
    %c0_106 = arith.constant 0 : index
    %c0_107 = arith.constant 0 : index
    %143 = vector.load %arg4[%c6_105, %c0_106, %c0_107] : memref<9x32x32xbf16, #tpu.memory_space<vmem>>, vector<1x32x32xbf16>
    %144 = vector.shape_cast %143 : vector<1x32x32xbf16> to vector<32x32xbf16>
    %cst_108 = arith.constant dense<0.000000e+00> : vector<32x256xf32>
    %145 = tpu.matmul %144, %142, %cst_108 {dimension_numbers = #tpu.dot_dimension_numbers<[1], [0], [0], [1], [0, 0, 1, 1], [], []>} : vector<32x32xbf16>, vector<32x256xbf16>, vector<32x256xf32> -> vector<32x256xf32>
    %146 = arith.addf %137, %145 : vector<32x256xf32>
    %c240_i32_109 = arith.constant 240 : i32
    %147 = tpu.dynamic_rotate %84 by %c240_i32_109 dim 1 : vector<32x256xf32>, i32 -> vector<32x256xf32>
    %c7_110 = arith.constant 7 : index
    %c0_111 = arith.constant 0 : index
    %c0_112 = arith.constant 0 : index
    %148 = vector.load %arg6[%c7_110, %c0_111, %c0_112] : memref<9x32x256xf32, #tpu.memory_space<vmem>>, vector<1x32x256xf32>
    %149 = vector.shape_cast %148 : vector<1x32x256xf32> to vector<32x256xf32>
    %150 = arith.mulf %147, %149 : vector<32x256xf32>
    %151 = arith.truncf %150 : vector<32x256xf32> to vector<32x256xbf16>
    %c7_113 = arith.constant 7 : index
    %c0_114 = arith.constant 0 : index
    %c0_115 = arith.constant 0 : index
    %152 = vector.load %arg4[%c7_113, %c0_114, %c0_115] : memref<9x32x32xbf16, #tpu.memory_space<vmem>>, vector<1x32x32xbf16>
    %153 = vector.shape_cast %152 : vector<1x32x32xbf16> to vector<32x32xbf16>
    %cst_116 = arith.constant dense<0.000000e+00> : vector<32x256xf32>
    %154 = tpu.matmul %153, %151, %cst_116 {dimension_numbers = #tpu.dot_dimension_numbers<[1], [0], [0], [1], [0, 0, 1, 1], [], []>} : vector<32x32xbf16>, vector<32x256xbf16>, vector<32x256xf32> -> vector<32x256xf32>
    %155 = arith.addf %146, %154 : vector<32x256xf32>
    %c239_i32_117 = arith.constant 239 : i32
    %156 = tpu.dynamic_rotate %84 by %c239_i32_117 dim 1 : vector<32x256xf32>, i32 -> vector<32x256xf32>
    %c8_118 = arith.constant 8 : index
    %c0_119 = arith.constant 0 : index
    %c0_120 = arith.constant 0 : index
    %157 = vector.load %arg6[%c8_118, %c0_119, %c0_120] : memref<9x32x256xf32, #tpu.memory_space<vmem>>, vector<1x32x256xf32>
    %158 = vector.shape_cast %157 : vector<1x32x256xf32> to vector<32x256xf32>
    %159 = arith.mulf %156, %158 : vector<32x256xf32>
    %160 = arith.truncf %159 : vector<32x256xf32> to vector<32x256xbf16>
    %c8_121 = arith.constant 8 : index
    %c0_122 = arith.constant 0 : index
    %c0_123 = arith.constant 0 : index
    %161 = vector.load %arg4[%c8_121, %c0_122, %c0_123] : memref<9x32x32xbf16, #tpu.memory_space<vmem>>, vector<1x32x32xbf16>
    %162 = vector.shape_cast %161 : vector<1x32x32xbf16> to vector<32x32xbf16>
    %cst_124 = arith.constant dense<0.000000e+00> : vector<32x256xf32>
    %163 = tpu.matmul %162, %160, %cst_124 {dimension_numbers = #tpu.dot_dimension_numbers<[1], [0], [0], [1], [0, 0, 1, 1], [], []>} : vector<32x32xbf16>, vector<32x256xbf16>, vector<32x256xf32> -> vector<32x256xf32>
    %164 = arith.addf %155, %163 : vector<32x256xf32>
    %165 = arith.index_cast %c0_i32 : i32 to index
    %c0_125 = arith.constant 0 : index
    %c0_126 = arith.constant 0 : index
    %166 = vector.load %arg1[%165, %c0_125, %c0_126] : memref<1x32x256xf32, #tpu.memory_space<vmem>>, vector<1x32x256xf32>
    %167 = vector.shape_cast %166 : vector<1x32x256xf32> to vector<32x256xf32>
    %168 = arith.addf %167, %164 : vector<32x256xf32>
    %169 = arith.index_cast %c0_i32 : i32 to index
    %c0_127 = arith.constant 0 : index
    %c0_128 = arith.constant 0 : index
    %170 = vector.load %arg7[%169, %c0_127, %c0_128] : memref<1x32x256xf32, #tpu.memory_space<vmem>>, vector<1x32x256xf32>
    %171 = vector.shape_cast %170 : vector<1x32x256xf32> to vector<32x256xf32>
    %172 = vector.shape_cast %168 : vector<32x256xf32> to vector<1x32x256xf32>
    tpu.vector_store %arg7[%169, %c0_127, %c0_128], %172 {strides = array<i32>} : memref<1x32x256xf32, #tpu.memory_space<vmem>>, vector<1x32x256xf32>,
    %c1_i32_129 = arith.constant 1 : i32
    return
  }
  func.func @transform_0(%arg0: i32) -> (i32, i32, i32) {
    %c0_i32 = arith.constant 0 : i32
    %c0_i32_0 = arith.constant 0 : i32
    %c0_i32_1 = arith.constant 0 : i32
    return %arg0, %c0_i32, %c0_i32_0 : i32, i32, i32
  }
  func.func @transform_1(%arg0: i32) -> (i32, i32, i32) {
    %c0_i32 = arith.constant 0 : i32
    %c0_i32_0 = arith.constant 0 : i32
    %c0_i32_1 = arith.constant 0 : i32
    %c0_i32_2 = arith.constant 0 : i32
    return %c0_i32, %c0_i32_0, %c0_i32_1 : i32, i32, i32
  }
  func.func @transform_2(%arg0: i32) -> (i32, i32) {
    %c0_i32 = arith.constant 0 : i32
    %c0_i32_0 = arith.constant 0 : i32
    %c0_i32_1 = arith.constant 0 : i32
    return %c0_i32, %c0_i32_0 : i32, i32
  }
  func.func @transform_3(%arg0: i32) -> (i32, i32, i32) {
    %c0_i32 = arith.constant 0 : i32
    %c0_i32_0 = arith.constant 0 : i32
    %c0_i32_1 = arith.constant 0 : i32
    %c0_i32_2 = arith.constant 0 : i32
    return %c0_i32, %c0_i32_0, %c0_i32_1 : i32, i32, i32
  }
  func.func @transform_4(%arg0: i32) -> (i32, i32) {
    %c0_i32 = arith.constant 0 : i32
    %c0_i32_0 = arith.constant 0 : i32
    %c0_i32_1 = arith.constant 0 : i32
    return %c0_i32, %c0_i32_0 : i32, i32
  }
  func.func @transform_5(%arg0: i32) -> (i32, i32, i32) {
    %c0_i32 = arith.constant 0 : i32
    %c0_i32_0 = arith.constant 0 : i32
    %c0_i32_1 = arith.constant 0 : i32
    %c0_i32_2 = arith.constant 0 : i32
    return %c0_i32, %c0_i32_0, %c0_i32_1 : i32, i32, i32
  }
  func.func @transform_6(%arg0: i32) -> (i32, i32, i32) {
    %c0_i32 = arith.constant 0 : i32
    %c0_i32_0 = arith.constant 0 : i32
    %c0_i32_1 = arith.constant 0 : i32
    return %arg0, %c0_i32, %c0_i32_0 : i32, i32, i32
  }
}

</mosaic_0001>

<llo_original>
// kernel: tpu_custom_call.1
$region0: #{tpu_custom_call.1}
  #allocation0 [shape = 'u32[]', space=smem, size = 0x4, offset = 0x4, fixed_abs, tag = 'smem constant byte address 0x4 - core index']
  #allocation1 [shape = 'u32[144,128]{1,0:T(1,128)}', space=vmem, size = 0x12000, scoped, tag = 'internal scratch']
  %s0 = inlined_call_operand.hbm [shape: f32[2,32,256], index: 0, kind: input, shape index: {}]
  %s1 = inlined_call_operand.hbm [shape: bf16[9,32,32], index: 1, kind: input, shape index: {}]
  %s2 = inlined_call_operand.vmem [shape: f32[32,1], index: 2, kind: input, shape index: {}]
  %s3 = inlined_call_operand.hbm [shape: bf16[9,32,32], index: 3, kind: input, shape index: {}]
  %s4 = inlined_call_operand.vmem [shape: f32[32,1], index: 4, kind: input, shape index: {}]
  %s5 = inlined_call_operand.hbm [shape: f32[9,32,256], index: 5, kind: input, shape index: {}]
  %s6 = inlined_call_operand.hbm [shape: f32[2,32,256], index: 6, kind: output, shape index: {}]
  %s7 = sld [smem:[#allocation0]]
  $region73: #{tpu_custom_call.1} parent=0
    _
  %s9 = ssub.s32 1, %s7
  %s10 = scalar_select 0, %s9, %s7
  $region1: #{tpu_custom_call.1} parent=0
    #allocation2 [shape = 'u8[65536]{0}', space=vmem, size = 0x10000, scoped, tag = 'input window, operand 0']
    #allocation3 [shape = 's32[2]{0}', space=sflag, size = 0x8, scoped, tag = 'scoped memory for tpu_custom_call.1']
    #allocation4 [shape = 's32[2]{0}', space=sflag, size = 0x8, scoped, tag = 'scoped memory for tpu_custom_call.1']
    #allocation5 [shape = 'u8[73728]{0}', space=vmem, size = 0x12000, scoped, tag = 'input window, operand 1, single buffered']
    #allocation6 [shape = 's32[1]{0}', space=sflag, size = 0x4, scoped, tag = 'scoped memory for tpu_custom_call.1']
    #allocation7 [shape = 'u8[73728]{0}', space=vmem, size = 0x12000, scoped, tag = 'input window, operand 3, single buffered']
    #allocation8 [shape = 'u8[294912]{0}', space=vmem, size = 0x48000, scoped, tag = 'input window, operand 5, single buffered']
    #allocation9 [shape = 's32[1]{0}', space=sflag, size = 0x4, scoped, tag = 'scoped memory for tpu_custom_call.1']
    #allocation10 [shape = 'u8[65536]{0}', space=vmem, size = 0x10000, scoped, tag = 'output window, operand 0']
    %11 = vsyncpa [#allocation3], 0
    %s12 = scalar_lea.sflag [#allocation3], 1
    %13 = vsyncpa %s12, 0
    %14 = vsyncpa [#allocation6], 0
    %15 = vsyncpa [#allocation9], 0
    %16 = vsyncpa [#allocation4], 0
    %s17 = scalar_lea.sflag [#allocation4], 1
    %18 = vsyncpa %s17, 0
    loop: start=0, step=1, limit=4
    $region2: #{tpu_custom_call.1} parent=1 // loop_pre_header
      _
    $region3: #{tpu_custom_call.1} parent=1 // loop_header
      %s20 = sphi 0, %s24
      %p21 = scmp.ge.s32.totalorder %s20, 4
      %s30 = sphi 0, %s32
      %s33 = sphi 0, %s30
      %s34 = sphi 0, %s33
      %s50 = sphi 0, %s34
      %s54 = sphi 0, %s54
      %s56 = sphi 0, %s54
      %s57 = sphi 0, %s56
      %s71 = sphi 0, %s57
      %s75 = sphi 0, %s75
      %s77 = sphi 0, %s75
      %s78 = sphi 0, %s77
      %s92 = sphi 0, %s78
      %s96 = sphi 0, %s96
      %s98 = sphi 0, %s96
      %s99 = sphi 0, %s98
      %s113 = sphi 0, %s99
      %s117 = sphi 0, %s117
      %s119 = sphi 0, %s117
      %s120 = sphi 0, %s119
      %s134 = sphi 0, %s120
      %s138 = sphi 0, %s138
      %s140 = sphi 0, %s138
      %s141 = sphi 0, %s140
      %s155 = sphi 0, %s141
      %s161 = sphi 0, %s163
      %s164 = sphi 0, %s161
      %s165 = sphi 0, %s164
      %s181 = sphi 0, %s165
    $region4: #{tpu_custom_call.1} parent=1 // loop_header_branch
      %23 = sbr.rel (%p21) target = $region8
    $region5: #{tpu_custom_call.1} parent=1 // loop_body
      %s25 = ssub.s32 %s20, 1
      %s26 = ssub.s32 %s20, 2
      %s27 = sadd.s32 %s20, 1
      %s28 = ssub.s32 %s20, %s27
      %p29 = scmp.eq.s32.totalorder %s28, 0
      %s31 = sadd.s32 %s30, 1
      %s32 = scalar_select %p29, %s30, %s31
      %p35 = pneg %p29
      %p36 = scmp.eq.s32.totalorder %s20, 1
      %p37 = por %p35, %p36
      %p38 = scmp.ne.s32.totalorder %s30, %s33
      %p39 = scmp.eq.s32.totalorder %s20, 0
      %p40 = por %p38, %p39
      %p41 = scmp.ne.s32.totalorder %s30, %s33
      %p42 = scmp.eq.s32.totalorder %s25, 1
      %p43 = por %p41, %p42
      %p44 = scmp.ne.s32.totalorder %s33, %s34
      %p45 = scmp.eq.s32.totalorder %s25, 0
      %p46 = por %p44, %p45
      %p47 = scmp.ne.s32.totalorder %s33, %s34
      %p48 = scmp.eq.s32.totalorder %s26, 1
      %p49 = por %p47, %p48
      %p51 = scmp.ne.s32.totalorder %s34, %s50
      %p52 = scmp.eq.s32.totalorder %s26, 0
      %p53 = por %p51, %p52
      %s55 = sadd.s32 %s54, 1
      %p58 = scmp.eq.s32.totalorder %s20, 1
      %p59 = scmp.ne.s32.totalorder %s54, %s56
      %p60 = scmp.eq.s32.totalorder %s20, 0
      %p61 = por %p59, %p60
      %p62 = scmp.ne.s32.totalorder %s54, %s56
      %p63 = scmp.eq.s32.totalorder %s25, 1
      %p64 = por %p62, %p63
      %p65 = scmp.ne.s32.totalorder %s56, %s57
      %p66 = scmp.eq.s32.totalorder %s25, 0
      %p67 = por %p65, %p66
      %p68 = scmp.ne.s32.totalorder %s56, %s57
      %p69 = scmp.eq.s32.totalorder %s26, 1
      %p70 = por %p68, %p69
      %p72 = scmp.ne.s32.totalorder %s57, %s71
      %p73 = scmp.eq.s32.totalorder %s26, 0
      %p74 = por %p72, %p73
      %s76 = sadd.s32 %s75, 1
      %p79 = scmp.eq.s32.totalorder %s20, 1
      %p80 = scmp.ne.s32.totalorder %s75, %s77
      %p81 = scmp.eq.s32.totalorder %s20, 0
      %p82 = por %p80, %p81
      %p83 = scmp.ne.s32.totalorder %s75, %s77
      %p84 = scmp.eq.s32.totalorder %s25, 1
      %p85 = por %p83, %p84
      %p86 = scmp.ne.s32.totalorder %s77, %s78
      %p87 = scmp.eq.s32.totalorder %s25, 0
      %p88 = por %p86, %p87
      %p89 = scmp.ne.s32.totalorder %s77, %s78
      %p90 = scmp.eq.s32.totalorder %s26, 1
      %p91 = por %p89, %p90
      %p93 = scmp.ne.s32.totalorder %s78, %s92
      %p94 = scmp.eq.s32.totalorder %s26, 0
      %p95 = por %p93, %p94
      %s97 = sadd.s32 %s96, 1
      %p100 = scmp.eq.s32.totalorder %s20, 1
      %p101 = scmp.ne.s32.totalorder %s96, %s98
      %p102 = scmp.eq.s32.totalorder %s20, 0
      %p103 = por %p101, %p102
      %p104 = scmp.ne.s32.totalorder %s96, %s98
      %p105 = scmp.eq.s32.totalorder %s25, 1
      %p106 = por %p104, %p105
      %p107 = scmp.ne.s32.totalorder %s98, %s99
      %p108 = scmp.eq.s32.totalorder %s25, 0
      %p109 = por %p107, %p108
      %p110 = scmp.ne.s32.totalorder %s98, %s99
      %p111 = scmp.eq.s32.totalorder %s26, 1
      %p112 = por %p110, %p111
      %p114 = scmp.ne.s32.totalorder %s99, %s113
      %p115 = scmp.eq.s32.totalorder %s26, 0
      %p116 = por %p114, %p115
      %s118 = sadd.s32 %s117, 1
      %p121 = scmp.eq.s32.totalorder %s20, 1
      %p122 = scmp.ne.s32.totalorder %s117, %s119
      %p123 = scmp.eq.s32.totalorder %s20, 0
      %p124 = por %p122, %p123
      %p125 = scmp.ne.s32.totalorder %s117, %s119
      %p126 = scmp.eq.s32.totalorder %s25, 1
      %p127 = por %p125, %p126
      %p128 = scmp.ne.s32.totalorder %s119, %s120
      %p129 = scmp.eq.s32.totalorder %s25, 0
      %p130 = por %p128, %p129
      %p131 = scmp.ne.s32.totalorder %s119, %s120
      %p132 = scmp.eq.s32.totalorder %s26, 1
      %p133 = por %p131, %p132
      %p135 = scmp.ne.s32.totalorder %s120, %s134
      %p136 = scmp.eq.s32.totalorder %s26, 0
      %p137 = por %p135, %p136
      %s139 = sadd.s32 %s138, 1
      %p142 = scmp.eq.s32.totalorder %s20, 1
      %p143 = scmp.ne.s32.totalorder %s138, %s140
      %p144 = scmp.eq.s32.totalorder %s20, 0
      %p145 = por %p143, %p144
      %p146 = scmp.ne.s32.totalorder %s138, %s140
      %p147 = scmp.eq.s32.totalorder %s25, 1
      %p148 = por %p146, %p147
      %p149 = scmp.ne.s32.totalorder %s140, %s141
      %p150 = scmp.eq.s32.totalorder %s25, 0
      %p151 = por %p149, %p150
      %p152 = scmp.ne.s32.totalorder %s140, %s141
      %p153 = scmp.eq.s32.totalorder %s26, 1
      %p154 = por %p152, %p153
      %p156 = scmp.ne.s32.totalorder %s141, %s155
      %p157 = scmp.eq.s32.totalorder %s26, 0
      %p158 = por %p156, %p157
      %s159 = ssub.s32 %s20, %s27
      %p160 = scmp.eq.s32.totalorder %s159, 0
      %s162 = sadd.s32 %s161, 1
      %s163 = scalar_select %p160, %s161, %s162
      %p166 = pneg %p160
      %p167 = scmp.eq.s32.totalorder %s20, 1
      %p168 = por %p166, %p167
      %p169 = scmp.ne.s32.totalorder %s161, %s164
      %p170 = scmp.eq.s32.totalorder %s20, 0
      %p171 = por %p169, %p170
      %p172 = scmp.ne.s32.totalorder %s161, %s164
      %p173 = scmp.eq.s32.totalorder %s25, 1
      %p174 = por %p172, %p173
      %p175 = scmp.ne.s32.totalorder %s164, %s165
      %p176 = scmp.eq.s32.totalorder %s25, 0
      %p177 = por %p175, %p176
      %p178 = scmp.ne.s32.totalorder %s164, %s165
      %p179 = scmp.eq.s32.totalorder %s26, 1
      %p180 = por %p178, %p179
      %p182 = scmp.ne.s32.totalorder %s165, %s181
      %p183 = scmp.eq.s32.totalorder %s26, 0
      %p184 = por %p182, %p183
      %p185 = scmp.le.s32.totalorder 1, %s20
      %p186 = scmp.lt.s32.totalorder %s20, 3
      %p187 = pnand %p185, %p186
      %p188 = pneg %p187
      // Predicated region
      $region9: #{tpu_custom_call.1} parent=5 // pred_check
        _
      $region10: #{tpu_custom_call.1} parent=5 // pred_check_branch
        %190 = sbr.rel (%p187) target = $region12
      $region11: #{tpu_custom_call.1} parent=5 // pred_region
        %s191 = ssub.s32 %s20, 1
        // Predicated region
        $region13: #{tpu_custom_call.1} parent=11 // pred_check
          %p192 = pneg %p67
        $region14: #{tpu_custom_call.1} parent=11 // pred_check_branch
          %194 = sbr.rel (%p192) target = $region16
        $region15: #{tpu_custom_call.1} parent=11 // pred_region
          %s196 = ssub.s32 2304, 2304
          %197 = vsyncadd [#allocation6], %s196
          %s198 = sshll.u32 [#allocation5], 4
          %s199 = int_to_ptr.vmem [resolvable:$true] %s198
          %204 = dma.hbm_to_vmem [thread:$0]  %s1, 2304, %s199, [#allocation6], 64, 64, 4
        $region16: #{tpu_custom_call.1} parent=11 // pred_fallthru
          _
        // Predicated region
        $region17: #{tpu_custom_call.1} parent=11 // pred_check
          %p205 = pneg %p88
        $region18: #{tpu_custom_call.1} parent=11 // pred_check_branch
          %207 = sbr.rel (%p205) target = $region20
        $region19: #{tpu_custom_call.1} parent=11 // pred_region
          _
        $region20: #{tpu_custom_call.1} parent=11 // pred_fallthru
          _
        // Predicated region
        $region21: #{tpu_custom_call.1} parent=11 // pred_check
          %p208 = pneg %p109
        $region22: #{tpu_custom_call.1} parent=11 // pred_check_branch
          %210 = sbr.rel (%p208) target = $region24
        $region23: #{tpu_custom_call.1} parent=11 // pred_region
          %s212 = ssub.s32 2304, 2304
          %213 = vsyncadd [#allocation6], %s212
          %s214 = sshll.u32 [#allocation7], 4
          %s215 = int_to_ptr.vmem [resolvable:$true] %s214
          %220 = dma.hbm_to_vmem [thread:$0]  %s3, 2304, %s215, [#allocation6], 64, 64, 4
        $region24: #{tpu_custom_call.1} parent=11 // pred_fallthru
          _
        // Predicated region
        $region25: #{tpu_custom_call.1} parent=11 // pred_check
          %p221 = pneg %p130
        $region26: #{tpu_custom_call.1} parent=11 // pred_check_branch
          %223 = sbr.rel (%p221) target = $region28
        $region27: #{tpu_custom_call.1} parent=11 // pred_region
          _
        $region28: #{tpu_custom_call.1} parent=11 // pred_fallthru
          _
        // Predicated region
        $region29: #{tpu_custom_call.1} parent=11 // pred_check
          %p224 = pneg %p151
        $region30: #{tpu_custom_call.1} parent=11 // pred_check_branch
          %226 = sbr.rel (%p224) target = $region32
        $region31: #{tpu_custom_call.1} parent=11 // pred_region
          %s228 = ssub.s32 9216, 9216
          %229 = vsyncadd [#allocation9], %s228
          %s230 = sshll.u32 [#allocation8], 4
          %s231 = int_to_ptr.vmem [resolvable:$true] %s230
          %236 = dma.hbm_to_vmem [thread:$0]  %s5, 9216, %s231, [#allocation9], 256, 256, 16
        $region32: #{tpu_custom_call.1} parent=11 // pred_fallthru
          _
      $region12: #{tpu_custom_call.1} parent=5 // pred_fallthru
        _
      %p237 = scmp.lt.s32.totalorder %s20, 2
      // Predicated region
      $region33: #{tpu_custom_call.1} parent=5 // pred_check
        %p238 = pneg %p237
      $region34: #{tpu_custom_call.1} parent=5 // pred_check_branch
        %240 = sbr.rel (%p238) target = $region36
      $region35: #{tpu_custom_call.1} parent=5 // pred_region
        // Predicated region
        $region37: #{tpu_custom_call.1} parent=35 // pred_check
          %p241 = pneg %p40
        $region38: #{tpu_custom_call.1} parent=35 // pred_check_branch
          %243 = sbr.rel (%p241) target = $region40
        $region39: #{tpu_custom_call.1} parent=35 // pred_region
          %s244 = sand.u32 %s30, 1
          %s245 = scalar_lea.sflag [#allocation3], %s244
          %s246 = sand.u32 %s30, 1
          %s247 = smul.addr %s246, 64
          %s248 = scalar_lea.vmem [#allocation2], %s247
          %s250 = ssub.s32 1024, 1024
          %251 = vsyncadd %s245, %s250
          %s252 = smul.addr %s20, 8
          %s253 = smul.addr %s252, 128
          %s254 = scalar_lea.hbm %s0, %s253
          %s255 = sshll.u32 %s248, 4
          %s256 = int_to_ptr.vmem [resolvable:$true] %s255
          %261 = dma.hbm_to_vmem [thread:$0]  %s254, 1024, %s256, %s245, 256, 256, 16
        $region40: #{tpu_custom_call.1} parent=35 // pred_fallthru
          _
      $region36: #{tpu_custom_call.1} parent=5 // pred_fallthru
        _
      %p262 = scmp.le.s32.totalorder 1, %s20
      %p263 = scmp.lt.s32.totalorder %s20, 3
      %p264 = pnand %p262, %p263
      %p265 = pneg %p264
      // Predicated region
      $region41: #{tpu_custom_call.1} parent=5 // pred_check
        _
      $region42: #{tpu_custom_call.1} parent=5 // pred_check_branch
        %267 = sbr.rel (%p264) target = $region44
      $region43: #{tpu_custom_call.1} parent=5 // pred_region
        %s268 = ssub.s32 %s20, 1
        %s269 = sand.u32 %s33, 1
        %s270 = scalar_lea.sflag [#allocation3], %s269
        %s271 = sand.u32 %s33, 1
        %s272 = smul.addr %s271, 64
        %s273 = scalar_lea.vmem [#allocation2], %s272
        // Predicated region
        $region45: #{tpu_custom_call.1} parent=43 // pred_check
          %p274 = pneg %p46
        $region46: #{tpu_custom_call.1} parent=43 // pred_check_branch
          %276 = sbr.rel (%p274) target = $region48
        $region47: #{tpu_custom_call.1} parent=43 // pred_region
          %277 = dma.done %s270, 1024
        $region48: #{tpu_custom_call.1} parent=43 // pred_fallthru
          _
        // Predicated region
        $region49: #{tpu_custom_call.1} parent=43 // pred_check
          %p278 = pneg %p67
        $region50: #{tpu_custom_call.1} parent=43 // pred_check_branch
          %280 = sbr.rel (%p278) target = $region52
        $region51: #{tpu_custom_call.1} parent=43 // pred_region
          %281 = dma.done [#allocation6], 2304
        $region52: #{tpu_custom_call.1} parent=43 // pred_fallthru
          _
        // Predicated region
        $region53: #{tpu_custom_call.1} parent=43 // pred_check
          %p282 = pneg %p109
        $region54: #{tpu_custom_call.1} parent=43 // pred_check_branch
          %284 = sbr.rel (%p282) target = $region56
        $region55: #{tpu_custom_call.1} parent=43 // pred_region
          %285 = dma.done [#allocation6], 2304
        $region56: #{tpu_custom_call.1} parent=43 // pred_fallthru
          _
        // Predicated region
        $region57: #{tpu_custom_call.1} parent=43 // pred_check
          %p286 = pneg %p151
        $region58: #{tpu_custom_call.1} parent=43 // pred_check_branch
          %288 = sbr.rel (%p286) target = $region60
        $region59: #{tpu_custom_call.1} parent=43 // pred_region
          %289 = dma.done [#allocation9], 9216
        $region60: #{tpu_custom_call.1} parent=43 // pred_fallthru
          _
        %s290 = sand.u32 %s33, 1
        %s291 = scalar_lea.sflag [#allocation3], %s290
        %s292 = sand.u32 %s33, 1
        %s293 = smul.addr %s292, 64
        %s294 = scalar_lea.vmem [#allocation2], %s293
        %p295 = pneg %p46
        %p296 = pneg %p43
        %p297 = pneg %p67
        %p298 = pneg %p64
        %p299 = pneg %p88
        %p300 = pneg %p85
        %p301 = pneg %p109
        %p302 = pneg %p106
        %p303 = pneg %p130
        %p304 = pneg %p127
        %p305 = pneg %p151
        %p306 = pneg %p148
        %p307 = pneg %p177
        %p308 = pneg %p174
        %s309 = sand.u32 %s164, 1
        %s310 = scalar_lea.sflag [#allocation4], %s309
        %s311 = sand.u32 %s164, 1
        %s312 = smul.addr %s311, 64
        %s313 = scalar_lea.vmem [#allocation10], %s312
        %v315 = vld [vmem:[%s273] sm:$0xff]
        %v316 = vld [vmem:[%s273 + $0x8] sm:$0xff]
        %v317 = vld [vmem:[%s273 + $0x10] sm:$0xff]
        %v318 = vld [vmem:[%s273 + $0x18] sm:$0xff]
        %v319 = vld [vmem:[%s273 + $0x20] sm:$0xff]
        %v320 = vld [vmem:[%s273 + $0x28] sm:$0xff]
        %v321 = vld [vmem:[%s273 + $0x30] sm:$0xff]
        %v322 = vld [vmem:[%s273 + $0x38] sm:$0xff]
        %v323 = vld [vmem:[%s2] sm:$0xff]
        %v324 = vld [vmem:[%s2 + $0x8] sm:$0xff]
        %v325 = vld [vmem:[%s2 + $0x10] sm:$0xff]
        %v326 = vld [vmem:[%s2 + $0x18] sm:$0xff]
        %328 = vset.pattern.permute.xlu0 0
        %329 = vperm.xlu0 %328, %v323
        %v330 = vpop.permute.xlu0 %329
        %333 = vset.pattern.permute.xlu0 0
        %334 = vperm.xlu0 %333, %v324
        %v335 = vpop.permute.xlu0 %334
        %338 = vset.pattern.permute.xlu0 0
        %339 = vperm.xlu0 %338, %v325
        %v340 = vpop.permute.xlu0 %339
        %343 = vset.pattern.permute.xlu0 0
        %344 = vperm.xlu0 %343, %v326
        %v345 = vpop.permute.xlu0 %344
        %347 = vrot.lane.b32.xlu0 %v315, 17
        %v348 = vpop.permute.xlu0 %347
        %349 = vrot.lane.b32.xlu0 %v317, 17
        %v350 = vpop.permute.xlu0 %349
        %351 = vrot.lane.b32.xlu0 %v319, 17
        %v352 = vpop.permute.xlu0 %351
        %353 = vrot.lane.b32.xlu0 %v321, 17
        %v354 = vpop.permute.xlu0 %353
        %355 = vrot.lane.b32.xlu0 %v316, 17
        %v356 = vpop.permute.xlu0 %355
        %357 = vrot.lane.b32.xlu0 %v318, 17
        %v358 = vpop.permute.xlu0 %357
        %359 = vrot.lane.b32.xlu0 %v320, 17
        %v360 = vpop.permute.xlu0 %359
        %361 = vrot.lane.b32.xlu0 %v322, 17
        %v362 = vpop.permute.xlu0 %361
        %v363 = vlaneseq
        %v364 = vand.u32 %v363, 127
        %vm365 = vcmp.lt.s32.totalorder %v364, 17
        %v366 = vsel %vm365, %v348, %v356
        %v367 = vsel %vm365, %v350, %v358
        %v368 = vsel %vm365, %v352, %v360
        %v369 = vsel %vm365, %v354, %v362
        %v370 = vsel %vm365, %v356, %v348
        %v371 = vsel %vm365, %v358, %v350
        %v372 = vsel %vm365, %v360, %v352
        %v373 = vsel %vm365, %v362, %v354
        %v374 = vld [vmem:[#allocation8] sm:$0xff]
        %v375 = vld [vmem:[#allocation8 + $0x8] sm:$0xff]
        %v376 = vld [vmem:[#allocation8 + $0x10] sm:$0xff]
        %v377 = vld [vmem:[#allocation8 + $0x18] sm:$0xff]
        %v378 = vld [vmem:[#allocation8 + $0x20] sm:$0xff]
        %v379 = vld [vmem:[#allocation8 + $0x28] sm:$0xff]
        %v380 = vld [vmem:[#allocation8 + $0x30] sm:$0xff]
        %v381 = vld [vmem:[#allocation8 + $0x38] sm:$0xff]
        %v382 = vmul.f32 %v370, %v374
        %v383 = vmul.f32 %v366, %v375
        %v384 = vmul.f32 %v371, %v376
        %v385 = vmul.f32 %v367, %v377
        %v386 = vmul.f32 %v372, %v378
        %v387 = vmul.f32 %v368, %v379
        %v388 = vmul.f32 %v373, %v380
        %v389 = vmul.f32 %v369, %v381
        %v390 = vpack.c.bf16 %v384, %v382
        %v391 = vpack.c.bf16 %v385, %v383
        %v392 = vpack.c.bf16 %v388, %v386
        %v393 = vpack.c.bf16 %v389, %v387
        %v394 = vld [vmem:[#allocation5] sm:$0xf]
        %v395 = vld [vmem:[#allocation5 + $0x4] sm:$0xf]
        %v396 = vld [vmem:[#allocation5 + $0x8] sm:$0xf]
        %v397 = vld [vmem:[#allocation5 + $0xc] sm:$0xf]
        %v402 = vunpack.c.l.b16 %v394
        %v403 = vunpack.c.l.b16 %v395
        %v404 = vunpack.c.l.b16 %v396
        %v405 = vunpack.c.l.b16 %v397
        %v406 = vpack.c.b16 %v403, %v402
        %v407 = vpack.c.b16 %v405, %v404
        %vm408 = vcmask 261120
        %v410 = vsel %vm408, %v406, 0
        %v413 = vsel %vm408, %v407, 0
        %415 = vmatprep.subr.bf16.mxu0 %v391
        %416 = vmatpush1.bf16.msra.mxu0 %v390
        %417 = vmatprep.subr.bf16.mxu0 %v393
        %418 = vmatpush1.bf16.msra.mxu0 %v392
        %419 = vmatprep.subr.bf16.mxu0 0
        %420 = vmatpush1.bf16.msra.mxu0 0
        %421 = vmatprep.subr.bf16.mxu0 0
        %422 = vmatpush1.bf16.msra.mxu0 0
        %423 = vmatprep.subr.bf16.mxu0 0
        %424 = vmatpush1.bf16.msra.mxu0 0
        %425 = vmatprep.subr.bf16.mxu0 0
        %426 = vmatpush1.bf16.msra.mxu0 0
        %427 = vmatprep.subr.bf16.mxu0 0
        %428 = vmatpush1.bf16.msra.mxu0 0
        %429 = vmatprep.subr.bf16.mxu0 0
        %430 = vmatpush1.bf16.msra.mxu0 0
        %431 = vmatprep.subr.bf16.mxu0 0
        %432 = vmatpush1.bf16.msra.mxu0 0
        %433 = vmatprep.subr.bf16.mxu0 0
        %434 = vmatpush1.bf16.msra.mxu0 0
        %435 = vmatprep.subr.bf16.mxu0 0
        %436 = vmatpush1.bf16.msra.mxu0 0
        %437 = vmatprep.subr.bf16.mxu0 0
        %438 = vmatpush1.bf16.msra.mxu0 0
        %439 = vmatprep.subr.bf16.mxu0 0
        %440 = vmatpush1.bf16.msra.mxu0 0
        %441 = vmatprep.subr.bf16.mxu0 0
        %442 = vmatpush1.bf16.msra.mxu0 0
        %443 = vmatprep.subr.bf16.mxu0 0
        %444 = vmatpush1.bf16.msra.mxu0 0
        %445 = vmatprep.subr.bf16.mxu0 0
        %446 = vmatpush1.bf16.msra.mxu0 0
        %447 = vmatprep.mubr.bf16.mxu0 0
        %448 = vmatmul.mubr.bf16.gmra.mrb[0].mxu0 %v410
        %v449 = vpop.f32.mrb[0].mxu0
        %v450 = vadd.f32 0.0, %v449
        %v451 = vpop.f32.mrb[0].mxu0
        %v452 = vadd.f32 0.0, %v451
        %v453 = vpop.f32.mrb[0].mxu0
        %v454 = vadd.f32 0.0, %v453
        %v455 = vpop.f32.mrb[0].mxu0
        %v456 = vadd.f32 0.0, %v455
        %457 = vmatprep.mubr.bf16.mxu0 0
        %458 = vmatmul.mubr.bf16.gmra.mrb[0].mxu0 %v413
        %v459 = vpop.f32.mrb[0].mxu0
        %v460 = vadd.f32 0.0, %v459
        %v461 = vpop.f32.mrb[0].mxu0
        %v462 = vadd.f32 0.0, %v461
        %v463 = vpop.f32.mrb[0].mxu0
        %v464 = vadd.f32 0.0, %v463
        %v465 = vpop.f32.mrb[0].mxu0
        %v466 = vadd.f32 0.0, %v465
        %467 = vdwg.mxu0
        %v468 = vadd.f32 %v330, %v450
        %v469 = vadd.f32 %v330, %v452
        %v470 = vadd.f32 %v335, %v454
        %v471 = vadd.f32 %v335, %v456
        %v472 = vadd.f32 %v340, %v460
        %v473 = vadd.f32 %v340, %v462
        %v474 = vadd.f32 %v345, %v464
        %v475 = vadd.f32 %v345, %v466
        %476 = vrot.lane.b32.xlu0 %v315, 16
        %v477 = vpop.permute.xlu0 %476
        %478 = vrot.lane.b32.xlu0 %v317, 16
        %v479 = vpop.permute.xlu0 %478
        %480 = vrot.lane.b32.xlu0 %v319, 16
        %v481 = vpop.permute.xlu0 %480
        %482 = vrot.lane.b32.xlu0 %v321, 16
        %v483 = vpop.permute.xlu0 %482
        %484 = vrot.lane.b32.xlu0 %v316, 16
        %v485 = vpop.permute.xlu0 %484
        %486 = vrot.lane.b32.xlu0 %v318, 16
        %v487 = vpop.permute.xlu0 %486
        %488 = vrot.lane.b32.xlu0 %v320, 16
        %v489 = vpop.permute.xlu0 %488
        %490 = vrot.lane.b32.xlu0 %v322, 16
        %v491 = vpop.permute.xlu0 %490
        %vm492 = vcmp.lt.s32.totalorder %v364, 16
        %v493 = vsel %vm492, %v477, %v485
        %v494 = vsel %vm492, %v479, %v487
        %v495 = vsel %vm492, %v481, %v489
        %v496 = vsel %vm492, %v483, %v491
        %v497 = vsel %vm492, %v485, %v477
        %v498 = vsel %vm492, %v487, %v479
        %v499 = vsel %vm492, %v489, %v481
        %v500 = vsel %vm492, %v491, %v483
        %s501 = scalar_lea.vmem [#allocation8], 64
        %v502 = vld [vmem:[%s501] sm:$0xff]
        %v503 = vld [vmem:[%s501 + $0x8] sm:$0xff]
        %v504 = vld [vmem:[%s501 + $0x10] sm:$0xff]
        %v505 = vld [vmem:[%s501 + $0x18] sm:$0xff]
        %v506 = vld [vmem:[%s501 + $0x20] sm:$0xff]
        %v507 = vld [vmem:[%s501 + $0x28] sm:$0xff]
        %v508 = vld [vmem:[%s501 + $0x30] sm:$0xff]
        %v509 = vld [vmem:[%s501 + $0x38] sm:$0xff]
        %v510 = vmul.f32 %v497, %v502
        %v511 = vmul.f32 %v493, %v503
        %v512 = vmul.f32 %v498, %v504
        %v513 = vmul.f32 %v494, %v505
        %v514 = vmul.f32 %v499, %v506
        %v515 = vmul.f32 %v495, %v507
        %v516 = vmul.f32 %v500, %v508
        %v517 = vmul.f32 %v496, %v509
        %v518 = vpack.c.bf16 %v512, %v510
        %v519 = vpack.c.bf16 %v513, %v511
        %v520 = vpack.c.bf16 %v516, %v514
        %v521 = vpack.c.bf16 %v517, %v515
        %s522 = scalar_lea.vmem [#allocation5], 16
        %v523 = vld [vmem:[%s522] sm:$0xf]
        %v524 = vld [vmem:[%s522 + $0x4] sm:$0xf]
        %v525 = vld [vmem:[%s522 + $0x8] sm:$0xf]
        %v526 = vld [vmem:[%s522 + $0xc] sm:$0xf]
        %v531 = vunpack.c.l.b16 %v523
        %v532 = vunpack.c.l.b16 %v524
        %v533 = vunpack.c.l.b16 %v525
        %v534 = vunpack.c.l.b16 %v526
        %v535 = vpack.c.b16 %v532, %v531
        %v536 = vpack.c.b16 %v534, %v533
        %v538 = vsel %vm408, %v535, 0
        %v541 = vsel %vm408, %v536, 0
        %543 = vmatprep.subr.bf16.mxu0 %v519
        %544 = vmatpush1.bf16.msra.mxu0 %v518
        %545 = vmatprep.subr.bf16.mxu0 %v521
        %546 = vmatpush1.bf16.msra.mxu0 %v520
        %547 = vmatprep.subr.bf16.mxu0 0
        %548 = vmatpush1.bf16.msra.mxu0 0
        %549 = vmatprep.subr.bf16.mxu0 0
        %550 = vmatpush1.bf16.msra.mxu0 0
        %551 = vmatprep.subr.bf16.mxu0 0
        %552 = vmatpush1.bf16.msra.mxu0 0
        %553 = vmatprep.subr.bf16.mxu0 0
        %554 = vmatpush1.bf16.msra.mxu0 0
        %555 = vmatprep.subr.bf16.mxu0 0
        %556 = vmatpush1.bf16.msra.mxu0 0
        %557 = vmatprep.subr.bf16.mxu0 0
        %558 = vmatpush1.bf16.msra.mxu0 0
        %559 = vmatprep.subr.bf16.mxu0 0
        %560 = vmatpush1.bf16.msra.mxu0 0
        %561 = vmatprep.subr.bf16.mxu0 0
        %562 = vmatpush1.bf16.msra.mxu0 0
        %563 = vmatprep.subr.bf16.mxu0 0
        %564 = vmatpush1.bf16.msra.mxu0 0
        %565 = vmatprep.subr.bf16.mxu0 0
        %566 = vmatpush1.bf16.msra.mxu0 0
        %567 = vmatprep.subr.bf16.mxu0 0
        %568 = vmatpush1.bf16.msra.mxu0 0
        %569 = vmatprep.subr.bf16.mxu0 0
        %570 = vmatpush1.bf16.msra.mxu0 0
        %571 = vmatprep.subr.bf16.mxu0 0
        %572 = vmatpush1.bf16.msra.mxu0 0
        %573 = vmatprep.subr.bf16.mxu0 0
        %574 = vmatpush1.bf16.msra.mxu0 0
        %575 = vmatprep.mubr.bf16.mxu0 0
        %576 = vmatmul.mubr.bf16.gmra.mrb[0].mxu0 %v538
        %v577 = vpop.f32.mrb[0].mxu0
        %v578 = vadd.f32 0.0, %v577
        %v579 = vpop.f32.mrb[0].mxu0
        %v580 = vadd.f32 0.0, %v579
        %v581 = vpop.f32.mrb[0].mxu0
        %v582 = vadd.f32 0.0, %v581
        %v583 = vpop.f32.mrb[0].mxu0
        %v584 = vadd.f32 0.0, %v583
        %585 = vmatprep.mubr.bf16.mxu0 0
        %586 = vmatmul.mubr.bf16.gmra.mrb[0].mxu0 %v541
        %v587 = vpop.f32.mrb[0].mxu0
        %v588 = vadd.f32 0.0, %v587
        %v589 = vpop.f32.mrb[0].mxu0
        %v590 = vadd.f32 0.0, %v589
        %v591 = vpop.f32.mrb[0].mxu0
        %v592 = vadd.f32 0.0, %v591
        %v593 = vpop.f32.mrb[0].mxu0
        %v594 = vadd.f32 0.0, %v593
        %595 = vdwg.mxu0
        %v596 = vadd.f32 %v468, %v578
        %v597 = vadd.f32 %v469, %v580
        %v598 = vadd.f32 %v470, %v582
        %v599 = vadd.f32 %v471, %v584
        %v600 = vadd.f32 %v472, %v588
        %v601 = vadd.f32 %v473, %v590
        %v602 = vadd.f32 %v474, %v592
        %v603 = vadd.f32 %v475, %v594
        %604 = vrot.lane.b32.xlu0 %v315, 15
        %v605 = vpop.permute.xlu0 %604
        %606 = vrot.lane.b32.xlu0 %v317, 15
        %v607 = vpop.permute.xlu0 %606
        %608 = vrot.lane.b32.xlu0 %v319, 15
        %v609 = vpop.permute.xlu0 %608
        %610 = vrot.lane.b32.xlu0 %v321, 15
        %v611 = vpop.permute.xlu0 %610
        %612 = vrot.lane.b32.xlu0 %v316, 15
        %v613 = vpop.permute.xlu0 %612
        %614 = vrot.lane.b32.xlu0 %v318, 15
        %v615 = vpop.permute.xlu0 %614
        %616 = vrot.lane.b32.xlu0 %v320, 15
        %v617 = vpop.permute.xlu0 %616
        %618 = vrot.lane.b32.xlu0 %v322, 15
        %v619 = vpop.permute.xlu0 %618
        %vm620 = vcmp.lt.s32.totalorder %v364, 15
        %v621 = vsel %vm620, %v605, %v613
        %v622 = vsel %vm620, %v607, %v615
        %v623 = vsel %vm620, %v609, %v617
        %v624 = vsel %vm620, %v611, %v619
        %v625 = vsel %vm620, %v613, %v605
        %v626 = vsel %vm620, %v615, %v607
        %v627 = vsel %vm620, %v617, %v609
        %v628 = vsel %vm620, %v619, %v611
        %s629 = scalar_lea.vmem [#allocation8], 128
        %v630 = vld [vmem:[%s629] sm:$0xff]
        %v631 = vld [vmem:[%s629 + $0x8] sm:$0xff]
        %v632 = vld [vmem:[%s629 + $0x10] sm:$0xff]
        %v633 = vld [vmem:[%s629 + $0x18] sm:$0xff]
        %v634 = vld [vmem:[%s629 + $0x20] sm:$0xff]
        %v635 = vld [vmem:[%s629 + $0x28] sm:$0xff]
        %v636 = vld [vmem:[%s629 + $0x30] sm:$0xff]
        %v637 = vld [vmem:[%s629 + $0x38] sm:$0xff]
        %v638 = vmul.f32 %v625, %v630
        %v639 = vmul.f32 %v621, %v631
        %v640 = vmul.f32 %v626, %v632
        %v641 = vmul.f32 %v622, %v633
        %v642 = vmul.f32 %v627, %v634
        %v643 = vmul.f32 %v623, %v635
        %v644 = vmul.f32 %v628, %v636
        %v645 = vmul.f32 %v624, %v637
        %v646 = vpack.c.bf16 %v640, %v638
        %v647 = vpack.c.bf16 %v641, %v639
        %v648 = vpack.c.bf16 %v644, %v642
        %v649 = vpack.c.bf16 %v645, %v643
        %s650 = scalar_lea.vmem [#allocation5], 32
        %v651 = vld [vmem:[%s650] sm:$0xf]
        %v652 = vld [vmem:[%s650 + $0x4] sm:$0xf]
        %v653 = vld [vmem:[%s650 + $0x8] sm:$0xf]
        %v654 = vld [vmem:[%s650 + $0xc] sm:$0xf]
        %v659 = vunpack.c.l.b16 %v651
        %v660 = vunpack.c.l.b16 %v652
        %v661 = vunpack.c.l.b16 %v653
        %v662 = vunpack.c.l.b16 %v654
        %v663 = vpack.c.b16 %v660, %v659
        %v664 = vpack.c.b16 %v662, %v661
        %v666 = vsel %vm408, %v663, 0
        %v669 = vsel %vm408, %v664, 0
        %671 = vmatprep.subr.bf16.mxu0 %v647
        %672 = vmatpush1.bf16.msra.mxu0 %v646
        %673 = vmatprep.subr.bf16.mxu0 %v649
        %674 = vmatpush1.bf16.msra.mxu0 %v648
        %675 = vmatprep.subr.bf16.mxu0 0
        %676 = vmatpush1.bf16.msra.mxu0 0
        %677 = vmatprep.subr.bf16.mxu0 0
        %678 = vmatpush1.bf16.msra.mxu0 0
        %679 = vmatprep.subr.bf16.mxu0 0
        %680 = vmatpush1.bf16.msra.mxu0 0
        %681 = vmatprep.subr.bf16.mxu0 0
        %682 = vmatpush1.bf16.msra.mxu0 0
        %683 = vmatprep.subr.bf16.mxu0 0
        %684 = vmatpush1.bf16.msra.mxu0 0
        %685 = vmatprep.subr.bf16.mxu0 0
        %686 = vmatpush1.bf16.msra.mxu0 0
        %687 = vmatprep.subr.bf16.mxu0 0
        %688 = vmatpush1.bf16.msra.mxu0 0
        %689 = vmatprep.subr.bf16.mxu0 0
        %690 = vmatpush1.bf16.msra.mxu0 0
        %691 = vmatprep.subr.bf16.mxu0 0
        %692 = vmatpush1.bf16.msra.mxu0 0
        %693 = vmatprep.subr.bf16.mxu0 0
        %694 = vmatpush1.bf16.msra.mxu0 0
        %695 = vmatprep.subr.bf16.mxu0 0
        %696 = vmatpush1.bf16.msra.mxu0 0
        %697 = vmatprep.subr.bf16.mxu0 0
        %698 = vmatpush1.bf16.msra.mxu0 0
        %699 = vmatprep.subr.bf16.mxu0 0
        %700 = vmatpush1.bf16.msra.mxu0 0
        %701 = vmatprep.subr.bf16.mxu0 0
        %702 = vmatpush1.bf16.msra.mxu0 0
        %703 = vmatprep.mubr.bf16.mxu0 0
        %704 = vmatmul.mubr.bf16.gmra.mrb[0].mxu0 %v666
        %v705 = vpop.f32.mrb[0].mxu0
        %v706 = vadd.f32 0.0, %v705
        %v707 = vpop.f32.mrb[0].mxu0
        %v708 = vadd.f32 0.0, %v707
        %v709 = vpop.f32.mrb[0].mxu0
        %v710 = vadd.f32 0.0, %v709
        %v711 = vpop.f32.mrb[0].mxu0
        %v712 = vadd.f32 0.0, %v711
        %713 = vmatprep.mubr.bf16.mxu0 0
        %714 = vmatmul.mubr.bf16.gmra.mrb[0].mxu0 %v669
        %v715 = vpop.f32.mrb[0].mxu0
        %v716 = vadd.f32 0.0, %v715
        %v717 = vpop.f32.mrb[0].mxu0
        %v718 = vadd.f32 0.0, %v717
        %v719 = vpop.f32.mrb[0].mxu0
        %v720 = vadd.f32 0.0, %v719
        %v721 = vpop.f32.mrb[0].mxu0
        %v722 = vadd.f32 0.0, %v721
        %723 = vdwg.mxu0
        %v724 = vadd.f32 %v596, %v706
        %v725 = vadd.f32 %v597, %v708
        %v726 = vadd.f32 %v598, %v710
        %v727 = vadd.f32 %v599, %v712
        %v728 = vadd.f32 %v600, %v716
        %v729 = vadd.f32 %v601, %v718
        %v730 = vadd.f32 %v602, %v720
        %v731 = vadd.f32 %v603, %v722
        %732 = vrot.lane.b32.xlu0 %v315, 1
        %v733 = vpop.permute.xlu0 %732
        %734 = vrot.lane.b32.xlu0 %v317, 1
        %v735 = vpop.permute.xlu0 %734
        %736 = vrot.lane.b32.xlu0 %v319, 1
        %v737 = vpop.permute.xlu0 %736
        %738 = vrot.lane.b32.xlu0 %v321, 1
        %v739 = vpop.permute.xlu0 %738
        %740 = vrot.lane.b32.xlu0 %v316, 1
        %v741 = vpop.permute.xlu0 %740
        %742 = vrot.lane.b32.xlu0 %v318, 1
        %v743 = vpop.permute.xlu0 %742
        %744 = vrot.lane.b32.xlu0 %v320, 1
        %v745 = vpop.permute.xlu0 %744
        %746 = vrot.lane.b32.xlu0 %v322, 1
        %v747 = vpop.permute.xlu0 %746
        %vm748 = vcmp.lt.s32.totalorder %v364, 1
        %v749 = vsel %vm748, %v733, %v741
        %v750 = vsel %vm748, %v735, %v743
        %v751 = vsel %vm748, %v737, %v745
        %v752 = vsel %vm748, %v739, %v747
        %v753 = vsel %vm748, %v741, %v733
        %v754 = vsel %vm748, %v743, %v735
        %v755 = vsel %vm748, %v745, %v737
        %v756 = vsel %vm748, %v747, %v739
        %s757 = scalar_lea.vmem [#allocation8], 192
        %v758 = vld [vmem:[%s757] sm:$0xff]
        %v759 = vld [vmem:[%s757 + $0x8] sm:$0xff]
        %v760 = vld [vmem:[%s757 + $0x10] sm:$0xff]
        %v761 = vld [vmem:[%s757 + $0x18] sm:$0xff]
        %v762 = vld [vmem:[%s757 + $0x20] sm:$0xff]
        %v763 = vld [vmem:[%s757 + $0x28] sm:$0xff]
        %v764 = vld [vmem:[%s757 + $0x30] sm:$0xff]
        %v765 = vld [vmem:[%s757 + $0x38] sm:$0xff]
        %v766 = vmul.f32 %v753, %v758
        %v767 = vmul.f32 %v749, %v759
        %v768 = vmul.f32 %v754, %v760
        %v769 = vmul.f32 %v750, %v761
        %v770 = vmul.f32 %v755, %v762
        %v771 = vmul.f32 %v751, %v763
        %v772 = vmul.f32 %v756, %v764
        %v773 = vmul.f32 %v752, %v765
        %v774 = vpack.c.bf16 %v768, %v766
        %v775 = vpack.c.bf16 %v769, %v767
        %v776 = vpack.c.bf16 %v772, %v770
        %v777 = vpack.c.bf16 %v773, %v771
        %s778 = scalar_lea.vmem [#allocation5], 48
        %v779 = vld [vmem:[%s778] sm:$0xf]
        %v780 = vld [vmem:[%s778 + $0x4] sm:$0xf]
        %v781 = vld [vmem:[%s778 + $0x8] sm:$0xf]
        %v782 = vld [vmem:[%s778 + $0xc] sm:$0xf]
        %v787 = vunpack.c.l.b16 %v779
        %v788 = vunpack.c.l.b16 %v780
        %v789 = vunpack.c.l.b16 %v781
        %v790 = vunpack.c.l.b16 %v782
        %v791 = vpack.c.b16 %v788, %v787
        %v792 = vpack.c.b16 %v790, %v789
        %v794 = vsel %vm408, %v791, 0
        %v797 = vsel %vm408, %v792, 0
        %799 = vmatprep.subr.bf16.mxu0 %v775
        %800 = vmatpush1.bf16.msra.mxu0 %v774
        %801 = vmatprep.subr.bf16.mxu0 %v777
        %802 = vmatpush1.bf16.msra.mxu0 %v776
        %803 = vmatprep.subr.bf16.mxu0 0
        %804 = vmatpush1.bf16.msra.mxu0 0
        %805 = vmatprep.subr.bf16.mxu0 0
        %806 = vmatpush1.bf16.msra.mxu0 0
        %807 = vmatprep.subr.bf16.mxu0 0
        %808 = vmatpush1.bf16.msra.mxu0 0
        %809 = vmatprep.subr.bf16.mxu0 0
        %810 = vmatpush1.bf16.msra.mxu0 0
        %811 = vmatprep.subr.bf16.mxu0 0
        %812 = vmatpush1.bf16.msra.mxu0 0
        %813 = vmatprep.subr.bf16.mxu0 0
        %814 = vmatpush1.bf16.msra.mxu0 0
        %815 = vmatprep.subr.bf16.mxu0 0
        %816 = vmatpush1.bf16.msra.mxu0 0
        %817 = vmatprep.subr.bf16.mxu0 0
        %818 = vmatpush1.bf16.msra.mxu0 0
        %819 = vmatprep.subr.bf16.mxu0 0
        %820 = vmatpush1.bf16.msra.mxu0 0
        %821 = vmatprep.subr.bf16.mxu0 0
        %822 = vmatpush1.bf16.msra.mxu0 0
        %823 = vmatprep.subr.bf16.mxu0 0
        %824 = vmatpush1.bf16.msra.mxu0 0
        %825 = vmatprep.subr.bf16.mxu0 0
        %826 = vmatpush1.bf16.msra.mxu0 0
        %827 = vmatprep.subr.bf16.mxu0 0
        %828 = vmatpush1.bf16.msra.mxu0 0
        %829 = vmatprep.subr.bf16.mxu0 0
        %830 = vmatpush1.bf16.msra.mxu0 0
        %831 = vmatprep.mubr.bf16.mxu0 0
        %832 = vmatmul.mubr.bf16.gmra.mrb[0].mxu0 %v794
        %v833 = vpop.f32.mrb[0].mxu0
        %v834 = vadd.f32 0.0, %v833
        %v835 = vpop.f32.mrb[0].mxu0
        %v836 = vadd.f32 0.0, %v835
        %v837 = vpop.f32.mrb[0].mxu0
        %v838 = vadd.f32 0.0, %v837
        %v839 = vpop.f32.mrb[0].mxu0
        %v840 = vadd.f32 0.0, %v839
        %841 = vmatprep.mubr.bf16.mxu0 0
        %842 = vmatmul.mubr.bf16.gmra.mrb[0].mxu0 %v797
        %v843 = vpop.f32.mrb[0].mxu0
        %v844 = vadd.f32 0.0, %v843
        %v845 = vpop.f32.mrb[0].mxu0
        %v846 = vadd.f32 0.0, %v845
        %v847 = vpop.f32.mrb[0].mxu0
        %v848 = vadd.f32 0.0, %v847
        %v849 = vpop.f32.mrb[0].mxu0
        %v850 = vadd.f32 0.0, %v849
        %851 = vdwg.mxu0
        %v852 = vadd.f32 %v724, %v834
        %v853 = vadd.f32 %v725, %v836
        %v854 = vadd.f32 %v726, %v838
        %v855 = vadd.f32 %v727, %v840
        %v856 = vadd.f32 %v728, %v844
        %v857 = vadd.f32 %v729, %v846
        %v858 = vadd.f32 %v730, %v848
        %v859 = vadd.f32 %v731, %v850
        %v860 = vpack.c.bf16 %v317, %v315
        %v861 = vpack.c.bf16 %v318, %v316
        %v862 = vpack.c.bf16 %v321, %v319
        %v863 = vpack.c.bf16 %v322, %v320
        %s864 = scalar_lea.vmem [#allocation5], 64
        %v865 = vld [vmem:[%s864] sm:$0xf]
        %v866 = vld [vmem:[%s864 + $0x4] sm:$0xf]
        %v867 = vld [vmem:[%s864 + $0x8] sm:$0xf]
        %v868 = vld [vmem:[%s864 + $0xc] sm:$0xf]
        %v873 = vunpack.c.l.b16 %v865
        %v874 = vunpack.c.l.b16 %v866
        %v875 = vunpack.c.l.b16 %v867
        %v876 = vunpack.c.l.b16 %v868
        %v877 = vpack.c.b16 %v874, %v873
        %v878 = vpack.c.b16 %v876, %v875
        %v880 = vsel %vm408, %v877, 0
        %v883 = vsel %vm408, %v878, 0
        %885 = vmatprep.subr.bf16.mxu0 %v861
        %886 = vmatpush1.bf16.msra.mxu0 %v860
        %887 = vmatprep.subr.bf16.mxu0 %v863
        %888 = vmatpush1.bf16.msra.mxu0 %v862
        %889 = vmatprep.subr.bf16.mxu0 0
        %890 = vmatpush1.bf16.msra.mxu0 0
        %891 = vmatprep.subr.bf16.mxu0 0
        %892 = vmatpush1.bf16.msra.mxu0 0
        %893 = vmatprep.subr.bf16.mxu0 0
        %894 = vmatpush1.bf16.msra.mxu0 0
        %895 = vmatprep.subr.bf16.mxu0 0
        %896 = vmatpush1.bf16.msra.mxu0 0
        %897 = vmatprep.subr.bf16.mxu0 0
        %898 = vmatpush1.bf16.msra.mxu0 0
        %899 = vmatprep.subr.bf16.mxu0 0
        %900 = vmatpush1.bf16.msra.mxu0 0
        %901 = vmatprep.subr.bf16.mxu0 0
        %902 = vmatpush1.bf16.msra.mxu0 0
        %903 = vmatprep.subr.bf16.mxu0 0
        %904 = vmatpush1.bf16.msra.mxu0 0
        %905 = vmatprep.subr.bf16.mxu0 0
        %906 = vmatpush1.bf16.msra.mxu0 0
        %907 = vmatprep.subr.bf16.mxu0 0
        %908 = vmatpush1.bf16.msra.mxu0 0
        %909 = vmatprep.subr.bf16.mxu0 0
        %910 = vmatpush1.bf16.msra.mxu0 0
        %911 = vmatprep.subr.bf16.mxu0 0
        %912 = vmatpush1.bf16.msra.mxu0 0
        %913 = vmatprep.subr.bf16.mxu0 0
        %914 = vmatpush1.bf16.msra.mxu0 0
        %915 = vmatprep.subr.bf16.mxu0 0
        %916 = vmatpush1.bf16.msra.mxu0 0
        %917 = vmatprep.mubr.bf16.mxu0 0
        %918 = vmatmul.mubr.bf16.gmra.mrb[0].mxu0 %v880
        %v919 = vpop.f32.mrb[0].mxu0
        %v920 = vadd.f32 0.0, %v919
        %v921 = vpop.f32.mrb[0].mxu0
        %v922 = vadd.f32 0.0, %v921
        %v923 = vpop.f32.mrb[0].mxu0
        %v924 = vadd.f32 0.0, %v923
        %v925 = vpop.f32.mrb[0].mxu0
        %v926 = vadd.f32 0.0, %v925
        %927 = vmatprep.mubr.bf16.mxu0 0
        %928 = vmatmul.mubr.bf16.gmra.mrb[0].mxu0 %v883
        %v929 = vpop.f32.mrb[0].mxu0
        %v930 = vadd.f32 0.0, %v929
        %v931 = vpop.f32.mrb[0].mxu0
        %v932 = vadd.f32 0.0, %v931
        %v933 = vpop.f32.mrb[0].mxu0
        %v934 = vadd.f32 0.0, %v933
        %v935 = vpop.f32.mrb[0].mxu0
        %v936 = vadd.f32 0.0, %v935
        %937 = vdwg.mxu0
        %v938 = vadd.f32 %v852, %v920
        %v939 = vadd.f32 %v853, %v922
        %v940 = vadd.f32 %v854, %v924
        %v941 = vadd.f32 %v855, %v926
        %v942 = vadd.f32 %v856, %v930
        %v943 = vadd.f32 %v857, %v932
        %v944 = vadd.f32 %v858, %v934
        %v945 = vadd.f32 %v859, %v936
        %946 = vrot.lane.b32.xlu0 %v315, 127
        %v947 = vpop.permute.xlu0 %946
        %948 = vrot.lane.b32.xlu0 %v317, 127
        %v949 = vpop.permute.xlu0 %948
        %950 = vrot.lane.b32.xlu0 %v319, 127
        %v951 = vpop.permute.xlu0 %950
        %952 = vrot.lane.b32.xlu0 %v321, 127
        %v953 = vpop.permute.xlu0 %952
        %954 = vrot.lane.b32.xlu0 %v316, 127
        %v955 = vpop.permute.xlu0 %954
        %956 = vrot.lane.b32.xlu0 %v318, 127
        %v957 = vpop.permute.xlu0 %956
        %958 = vrot.lane.b32.xlu0 %v320, 127
        %v959 = vpop.permute.xlu0 %958
        %960 = vrot.lane.b32.xlu0 %v322, 127
        %v961 = vpop.permute.xlu0 %960
        %vm962 = vcmp.lt.s32.totalorder %v364, 127
        %v963 = vsel %vm962, %v947, %v955
        %v964 = vsel %vm962, %v949, %v957
        %v965 = vsel %vm962, %v951, %v959
        %v966 = vsel %vm962, %v953, %v961
        %v967 = vsel %vm962, %v955, %v947
        %v968 = vsel %vm962, %v957, %v949
        %v969 = vsel %vm962, %v959, %v951
        %v970 = vsel %vm962, %v961, %v953
        %s971 = scalar_lea.vmem [#allocation8], 320
        %v972 = vld [vmem:[%s971] sm:$0xff]
        %v973 = vld [vmem:[%s971 + $0x8] sm:$0xff]
        %v974 = vld [vmem:[%s971 + $0x10] sm:$0xff]
        %v975 = vld [vmem:[%s971 + $0x18] sm:$0xff]
        %v976 = vld [vmem:[%s971 + $0x20] sm:$0xff]
        %v977 = vld [vmem:[%s971 + $0x28] sm:$0xff]
        %v978 = vld [vmem:[%s971 + $0x30] sm:$0xff]
        %v979 = vld [vmem:[%s971 + $0x38] sm:$0xff]
        %v980 = vmul.f32 %v963, %v972
        %v981 = vmul.f32 %v967, %v973
        %v982 = vmul.f32 %v964, %v974
        %v983 = vmul.f32 %v968, %v975
        %v984 = vmul.f32 %v965, %v976
        %v985 = vmul.f32 %v969, %v977
        %v986 = vmul.f32 %v966, %v978
        %v987 = vmul.f32 %v970, %v979
        %v988 = vpack.c.bf16 %v982, %v980
        %v989 = vpack.c.bf16 %v983, %v981
        %v990 = vpack.c.bf16 %v986, %v984
        %v991 = vpack.c.bf16 %v987, %v985
        %s992 = scalar_lea.vmem [#allocation5], 80
        %v993 = vld [vmem:[%s992] sm:$0xf]
        %v994 = vld [vmem:[%s992 + $0x4] sm:$0xf]
        %v995 = vld [vmem:[%s992 + $0x8] sm:$0xf]
        %v996 = vld [vmem:[%s992 + $0xc] sm:$0xf]
        %v1001 = vunpack.c.l.b16 %v993
        %v1002 = vunpack.c.l.b16 %v994
        %v1003 = vunpack.c.l.b16 %v995
        %v1004 = vunpack.c.l.b16 %v996
        %v1005 = vpack.c.b16 %v1002, %v1001
        %v1006 = vpack.c.b16 %v1004, %v1003
        %v1008 = vsel %vm408, %v1005, 0
        %v1011 = vsel %vm408, %v1006, 0
        %1013 = vmatprep.subr.bf16.mxu0 %v989
        %1014 = vmatpush1.bf16.msra.mxu0 %v988
        %1015 = vmatprep.subr.bf16.mxu0 %v991
        %1016 = vmatpush1.bf16.msra.mxu0 %v990
        %1017 = vmatprep.subr.bf16.mxu0 0
        %1018 = vmatpush1.bf16.msra.mxu0 0
        %1019 = vmatprep.subr.bf16.mxu0 0
        %1020 = vmatpush1.bf16.msra.mxu0 0
        %1021 = vmatprep.subr.bf16.mxu0 0
        %1022 = vmatpush1.bf16.msra.mxu0 0
        %1023 = vmatprep.subr.bf16.mxu0 0
        %1024 = vmatpush1.bf16.msra.mxu0 0
        %1025 = vmatprep.subr.bf16.mxu0 0
        %1026 = vmatpush1.bf16.msra.mxu0 0
        %1027 = vmatprep.subr.bf16.mxu0 0
        %1028 = vmatpush1.bf16.msra.mxu0 0
        %1029 = vmatprep.subr.bf16.mxu0 0
        %1030 = vmatpush1.bf16.msra.mxu0 0
        %1031 = vmatprep.subr.bf16.mxu0 0
        %1032 = vmatpush1.bf16.msra.mxu0 0
        %1033 = vmatprep.subr.bf16.mxu0 0
        %1034 = vmatpush1.bf16.msra.mxu0 0
        %1035 = vmatprep.subr.bf16.mxu0 0
        %1036 = vmatpush1.bf16.msra.mxu0 0
        %1037 = vmatprep.subr.bf16.mxu0 0
        %1038 = vmatpush1.bf16.msra.mxu0 0
        %1039 = vmatprep.subr.bf16.mxu0 0
        %1040 = vmatpush1.bf16.msra.mxu0 0
        %1041 = vmatprep.subr.bf16.mxu0 0
        %1042 = vmatpush1.bf16.msra.mxu0 0
        %1043 = vmatprep.subr.bf16.mxu0 0
        %1044 = vmatpush1.bf16.msra.mxu0 0
        %1045 = vmatprep.mubr.bf16.mxu0 0
        %1046 = vmatmul.mubr.bf16.gmra.mrb[0].mxu0 %v1008
        %v1047 = vpop.f32.mrb[0].mxu0
        %v1048 = vadd.f32 0.0, %v1047
        %v1049 = vpop.f32.mrb[0].mxu0
        %v1050 = vadd.f32 0.0, %v1049
        %v1051 = vpop.f32.mrb[0].mxu0
        %v1052 = vadd.f32 0.0, %v1051
        %v1053 = vpop.f32.mrb[0].mxu0
        %v1054 = vadd.f32 0.0, %v1053
        %1055 = vmatprep.mubr.bf16.mxu0 0
        %1056 = vmatmul.mubr.bf16.gmra.mrb[0].mxu0 %v1011
        %v1057 = vpop.f32.mrb[0].mxu0
        %v1058 = vadd.f32 0.0, %v1057
        %v1059 = vpop.f32.mrb[0].mxu0
        %v1060 = vadd.f32 0.0, %v1059
        %v1061 = vpop.f32.mrb[0].mxu0
        %v1062 = vadd.f32 0.0, %v1061
        %v1063 = vpop.f32.mrb[0].mxu0
        %v1064 = vadd.f32 0.0, %v1063
        %1065 = vdwg.mxu0
        %v1066 = vadd.f32 %v938, %v1048
        %v1067 = vadd.f32 %v939, %v1050
        %v1068 = vadd.f32 %v940, %v1052
        %v1069 = vadd.f32 %v941, %v1054
        %v1070 = vadd.f32 %v942, %v1058
        %v1071 = vadd.f32 %v943, %v1060
        %v1072 = vadd.f32 %v944, %v1062
        %v1073 = vadd.f32 %v945, %v1064
        %1074 = vrot.lane.b32.xlu0 %v315, 113
        %v1075 = vpop.permute.xlu0 %1074
        %1076 = vrot.lane.b32.xlu0 %v317, 113
        %v1077 = vpop.permute.xlu0 %1076
        %1078 = vrot.lane.b32.xlu0 %v319, 113
        %v1079 = vpop.permute.xlu0 %1078
        %1080 = vrot.lane.b32.xlu0 %v321, 113
        %v1081 = vpop.permute.xlu0 %1080
        %1082 = vrot.lane.b32.xlu0 %v316, 113
        %v1083 = vpop.permute.xlu0 %1082
        %1084 = vrot.lane.b32.xlu0 %v318, 113
        %v1085 = vpop.permute.xlu0 %1084
        %1086 = vrot.lane.b32.xlu0 %v320, 113
        %v1087 = vpop.permute.xlu0 %1086
        %1088 = vrot.lane.b32.xlu0 %v322, 113
        %v1089 = vpop.permute.xlu0 %1088
        %vm1090 = vcmp.lt.s32.totalorder %v364, 113
        %v1091 = vsel %vm1090, %v1075, %v1083
        %v1092 = vsel %vm1090, %v1077, %v1085
        %v1093 = vsel %vm1090, %v1079, %v1087
        %v1094 = vsel %vm1090, %v1081, %v1089
        %v1095 = vsel %vm1090, %v1083, %v1075
        %v1096 = vsel %vm1090, %v1085, %v1077
        %v1097 = vsel %vm1090, %v1087, %v1079
        %v1098 = vsel %vm1090, %v1089, %v1081
        %s1099 = scalar_lea.vmem [#allocation8], 384
        %v1100 = vld [vmem:[%s1099] sm:$0xff]
        %v1101 = vld [vmem:[%s1099 + $0x8] sm:$0xff]
        %v1102 = vld [vmem:[%s1099 + $0x10] sm:$0xff]
        %v1103 = vld [vmem:[%s1099 + $0x18] sm:$0xff]
        %v1104 = vld [vmem:[%s1099 + $0x20] sm:$0xff]
        %v1105 = vld [vmem:[%s1099 + $0x28] sm:$0xff]
        %v1106 = vld [vmem:[%s1099 + $0x30] sm:$0xff]
        %v1107 = vld [vmem:[%s1099 + $0x38] sm:$0xff]
        %v1108 = vmul.f32 %v1091, %v1100
        %v1109 = vmul.f32 %v1095, %v1101
        %v1110 = vmul.f32 %v1092, %v1102
        %v1111 = vmul.f32 %v1096, %v1103
        %v1112 = vmul.f32 %v1093, %v1104
        %v1113 = vmul.f32 %v1097, %v1105
        %v1114 = vmul.f32 %v1094, %v1106
        %v1115 = vmul.f32 %v1098, %v1107
        %v1116 = vpack.c.bf16 %v1110, %v1108
        %v1117 = vpack.c.bf16 %v1111, %v1109
        %v1118 = vpack.c.bf16 %v1114, %v1112
        %v1119 = vpack.c.bf16 %v1115, %v1113
        %s1120 = scalar_lea.vmem [#allocation5], 96
        %v1121 = vld [vmem:[%s1120] sm:$0xf]
        %v1122 = vld [vmem:[%s1120 + $0x4] sm:$0xf]
        %v1123 = vld [vmem:[%s1120 + $0x8] sm:$0xf]
        %v1124 = vld [vmem:[%s1120 + $0xc] sm:$0xf]
        %v1129 = vunpack.c.l.b16 %v1121
        %v1130 = vunpack.c.l.b16 %v1122
        %v1131 = vunpack.c.l.b16 %v1123
        %v1132 = vunpack.c.l.b16 %v1124
        %v1133 = vpack.c.b16 %v1130, %v1129
        %v1134 = vpack.c.b16 %v1132, %v1131
        %v1136 = vsel %vm408, %v1133, 0
        %v1139 = vsel %vm408, %v1134, 0
        %1141 = vmatprep.subr.bf16.mxu0 %v1117
        %1142 = vmatpush1.bf16.msra.mxu0 %v1116
        %1143 = vmatprep.subr.bf16.mxu0 %v1119
        %1144 = vmatpush1.bf16.msra.mxu0 %v1118
        %1145 = vmatprep.subr.bf16.mxu0 0
        %1146 = vmatpush1.bf16.msra.mxu0 0
        %1147 = vmatprep.subr.bf16.mxu0 0
        %1148 = vmatpush1.bf16.msra.mxu0 0
        %1149 = vmatprep.subr.bf16.mxu0 0
        %1150 = vmatpush1.bf16.msra.mxu0 0
        %1151 = vmatprep.subr.bf16.mxu0 0
        %1152 = vmatpush1.bf16.msra.mxu0 0
        %1153 = vmatprep.subr.bf16.mxu0 0
        %1154 = vmatpush1.bf16.msra.mxu0 0
        %1155 = vmatprep.subr.bf16.mxu0 0
        %1156 = vmatpush1.bf16.msra.mxu0 0
        %1157 = vmatprep.subr.bf16.mxu0 0
        %1158 = vmatpush1.bf16.msra.mxu0 0
        %1159 = vmatprep.subr.bf16.mxu0 0
        %1160 = vmatpush1.bf16.msra.mxu0 0
        %1161 = vmatprep.subr.bf16.mxu0 0
        %1162 = vmatpush1.bf16.msra.mxu0 0
        %1163 = vmatprep.subr.bf16.mxu0 0
        %1164 = vmatpush1.bf16.msra.mxu0 0
        %1165 = vmatprep.subr.bf16.mxu0 0
        %1166 = vmatpush1.bf16.msra.mxu0 0
        %1167 = vmatprep.subr.bf16.mxu0 0
        %1168 = vmatpush1.bf16.msra.mxu0 0
        %1169 = vmatprep.subr.bf16.mxu0 0
        %1170 = vmatpush1.bf16.msra.mxu0 0
        %1171 = vmatprep.subr.bf16.mxu0 0
        %1172 = vmatpush1.bf16.msra.mxu0 0
        %1173 = vmatprep.mubr.bf16.mxu0 0
        %1174 = vmatmul.mubr.bf16.gmra.mrb[0].mxu0 %v1136
        %v1175 = vpop.f32.mrb[0].mxu0
        %v1176 = vadd.f32 0.0, %v1175
        %v1177 = vpop.f32.mrb[0].mxu0
        %v1178 = vadd.f32 0.0, %v1177
        %v1179 = vpop.f32.mrb[0].mxu0
        %v1180 = vadd.f32 0.0, %v1179
        %v1181 = vpop.f32.mrb[0].mxu0
        %v1182 = vadd.f32 0.0, %v1181
        %1183 = vmatprep.mubr.bf16.mxu0 0
        %1184 = vmatmul.mubr.bf16.gmra.mrb[0].mxu0 %v1139
        %v1185 = vpop.f32.mrb[0].mxu0
        %v1186 = vadd.f32 0.0, %v1185
        %v1187 = vpop.f32.mrb[0].mxu0
        %v1188 = vadd.f32 0.0, %v1187
        %v1189 = vpop.f32.mrb[0].mxu0
        %v1190 = vadd.f32 0.0, %v1189
        %v1191 = vpop.f32.mrb[0].mxu0
        %v1192 = vadd.f32 0.0, %v1191
        %1193 = vdwg.mxu0
        %v1194 = vadd.f32 %v1066, %v1176
        %v1195 = vadd.f32 %v1067, %v1178
        %v1196 = vadd.f32 %v1068, %v1180
        %v1197 = vadd.f32 %v1069, %v1182
        %v1198 = vadd.f32 %v1070, %v1186
        %v1199 = vadd.f32 %v1071, %v1188
        %v1200 = vadd.f32 %v1072, %v1190
        %v1201 = vadd.f32 %v1073, %v1192
        %1202 = vrot.lane.b32.xlu0 %v315, 112
        %v1203 = vpop.permute.xlu0 %1202
        %1204 = vrot.lane.b32.xlu0 %v317, 112
        %v1205 = vpop.permute.xlu0 %1204
        %1206 = vrot.lane.b32.xlu0 %v319, 112
        %v1207 = vpop.permute.xlu0 %1206
        %1208 = vrot.lane.b32.xlu0 %v321, 112
        %v1209 = vpop.permute.xlu0 %1208
        %1210 = vrot.lane.b32.xlu0 %v316, 112
        %v1211 = vpop.permute.xlu0 %1210
        %1212 = vrot.lane.b32.xlu0 %v318, 112
        %v1213 = vpop.permute.xlu0 %1212
        %1214 = vrot.lane.b32.xlu0 %v320, 112
        %v1215 = vpop.permute.xlu0 %1214
        %1216 = vrot.lane.b32.xlu0 %v322, 112
        %v1217 = vpop.permute.xlu0 %1216
        %vm1218 = vcmp.lt.s32.totalorder %v364, 112
        %v1219 = vsel %vm1218, %v1203, %v1211
        %v1220 = vsel %vm1218, %v1205, %v1213
        %v1221 = vsel %vm1218, %v1207, %v1215
        %v1222 = vsel %vm1218, %v1209, %v1217
        %v1223 = vsel %vm1218, %v1211, %v1203
        %v1224 = vsel %vm1218, %v1213, %v1205
        %v1225 = vsel %vm1218, %v1215, %v1207
        %v1226 = vsel %vm1218, %v1217, %v1209
        %s1227 = scalar_lea.vmem [#allocation8], 448
        %v1228 = vld [vmem:[%s1227] sm:$0xff]
        %v1229 = vld [vmem:[%s1227 + $0x8] sm:$0xff]
        %v1230 = vld [vmem:[%s1227 + $0x10] sm:$0xff]
        %v1231 = vld [vmem:[%s1227 + $0x18] sm:$0xff]
        %v1232 = vld [vmem:[%s1227 + $0x20] sm:$0xff]
        %v1233 = vld [vmem:[%s1227 + $0x28] sm:$0xff]
        %v1234 = vld [vmem:[%s1227 + $0x30] sm:$0xff]
        %v1235 = vld [vmem:[%s1227 + $0x38] sm:$0xff]
        %v1236 = vmul.f32 %v1219, %v1228
        %v1237 = vmul.f32 %v1223, %v1229
        %v1238 = vmul.f32 %v1220, %v1230
        %v1239 = vmul.f32 %v1224, %v1231
        %v1240 = vmul.f32 %v1221, %v1232
        %v1241 = vmul.f32 %v1225, %v1233
        %v1242 = vmul.f32 %v1222, %v1234
        %v1243 = vmul.f32 %v1226, %v1235
        %v1244 = vpack.c.bf16 %v1238, %v1236
        %v1245 = vpack.c.bf16 %v1239, %v1237
        %v1246 = vpack.c.bf16 %v1242, %v1240
        %v1247 = vpack.c.bf16 %v1243, %v1241
        %s1248 = scalar_lea.vmem [#allocation5], 112
        %v1249 = vld [vmem:[%s1248] sm:$0xf]
        %v1250 = vld [vmem:[%s1248 + $0x4] sm:$0xf]
        %v1251 = vld [vmem:[%s1248 + $0x8] sm:$0xf]
        %v1252 = vld [vmem:[%s1248 + $0xc] sm:$0xf]
        %v1257 = vunpack.c.l.b16 %v1249
        %v1258 = vunpack.c.l.b16 %v1250
        %v1259 = vunpack.c.l.b16 %v1251
        %v1260 = vunpack.c.l.b16 %v1252
        %v1261 = vpack.c.b16 %v1258, %v1257
        %v1262 = vpack.c.b16 %v1260, %v1259
        %v1264 = vsel %vm408, %v1261, 0
        %v1267 = vsel %vm408, %v1262, 0
        %1269 = vmatprep.subr.bf16.mxu0 %v1245
        %1270 = vmatpush1.bf16.msra.mxu0 %v1244
        %1271 = vmatprep.subr.bf16.mxu0 %v1247
        %1272 = vmatpush1.bf16.msra.mxu0 %v1246
        %1273 = vmatprep.subr.bf16.mxu0 0
        %1274 = vmatpush1.bf16.msra.mxu0 0
        %1275 = vmatprep.subr.bf16.mxu0 0
        %1276 = vmatpush1.bf16.msra.mxu0 0
        %1277 = vmatprep.subr.bf16.mxu0 0
        %1278 = vmatpush1.bf16.msra.mxu0 0
        %1279 = vmatprep.subr.bf16.mxu0 0
        %1280 = vmatpush1.bf16.msra.mxu0 0
        %1281 = vmatprep.subr.bf16.mxu0 0
        %1282 = vmatpush1.bf16.msra.mxu0 0
        %1283 = vmatprep.subr.bf16.mxu0 0
        %1284 = vmatpush1.bf16.msra.mxu0 0
        %1285 = vmatprep.subr.bf16.mxu0 0
        %1286 = vmatpush1.bf16.msra.mxu0 0
        %1287 = vmatprep.subr.bf16.mxu0 0
        %1288 = vmatpush1.bf16.msra.mxu0 0
        %1289 = vmatprep.subr.bf16.mxu0 0
        %1290 = vmatpush1.bf16.msra.mxu0 0
        %1291 = vmatprep.subr.bf16.mxu0 0
        %1292 = vmatpush1.bf16.msra.mxu0 0
        %1293 = vmatprep.subr.bf16.mxu0 0
        %1294 = vmatpush1.bf16.msra.mxu0 0
        %1295 = vmatprep.subr.bf16.mxu0 0
        %1296 = vmatpush1.bf16.msra.mxu0 0
        %1297 = vmatprep.subr.bf16.mxu0 0
        %1298 = vmatpush1.bf16.msra.mxu0 0
        %1299 = vmatprep.subr.bf16.mxu0 0
        %1300 = vmatpush1.bf16.msra.mxu0 0
        %1301 = vmatprep.mubr.bf16.mxu0 0
        %1302 = vmatmul.mubr.bf16.gmra.mrb[0].mxu0 %v1264
        %v1303 = vpop.f32.mrb[0].mxu0
        %v1304 = vadd.f32 0.0, %v1303
        %v1305 = vpop.f32.mrb[0].mxu0
        %v1306 = vadd.f32 0.0, %v1305
        %v1307 = vpop.f32.mrb[0].mxu0
        %v1308 = vadd.f32 0.0, %v1307
        %v1309 = vpop.f32.mrb[0].mxu0
        %v1310 = vadd.f32 0.0, %v1309
        %1311 = vmatprep.mubr.bf16.mxu0 0
        %1312 = vmatmul.mubr.bf16.gmra.mrb[0].mxu0 %v1267
        %v1313 = vpop.f32.mrb[0].mxu0
        %v1314 = vadd.f32 0.0, %v1313
        %v1315 = vpop.f32.mrb[0].mxu0
        %v1316 = vadd.f32 0.0, %v1315
        %v1317 = vpop.f32.mrb[0].mxu0
        %v1318 = vadd.f32 0.0, %v1317
        %v1319 = vpop.f32.mrb[0].mxu0
        %v1320 = vadd.f32 0.0, %v1319
        %1321 = vdwg.mxu0
        %v1322 = vadd.f32 %v1194, %v1304
        %v1323 = vadd.f32 %v1195, %v1306
        %v1324 = vadd.f32 %v1196, %v1308
        %v1325 = vadd.f32 %v1197, %v1310
        %v1326 = vadd.f32 %v1198, %v1314
        %v1327 = vadd.f32 %v1199, %v1316
        %v1328 = vadd.f32 %v1200, %v1318
        %v1329 = vadd.f32 %v1201, %v1320
        %1330 = vrot.lane.b32.xlu0 %v315, 111
        %v1331 = vpop.permute.xlu0 %1330
        %1332 = vrot.lane.b32.xlu0 %v317, 111
        %v1333 = vpop.permute.xlu0 %1332
        %1334 = vrot.lane.b32.xlu0 %v319, 111
        %v1335 = vpop.permute.xlu0 %1334
        %1336 = vrot.lane.b32.xlu0 %v321, 111
        %v1337 = vpop.permute.xlu0 %1336
        %1338 = vrot.lane.b32.xlu0 %v316, 111
        %v1339 = vpop.permute.xlu0 %1338
        %1340 = vrot.lane.b32.xlu0 %v318, 111
        %v1341 = vpop.permute.xlu0 %1340
        %1342 = vrot.lane.b32.xlu0 %v320, 111
        %v1343 = vpop.permute.xlu0 %1342
        %1344 = vrot.lane.b32.xlu0 %v322, 111
        %v1345 = vpop.permute.xlu0 %1344
        %vm1346 = vcmp.lt.s32.totalorder %v364, 111
        %v1347 = vsel %vm1346, %v1331, %v1339
        %v1348 = vsel %vm1346, %v1333, %v1341
        %v1349 = vsel %vm1346, %v1335, %v1343
        %v1350 = vsel %vm1346, %v1337, %v1345
        %v1351 = vsel %vm1346, %v1339, %v1331
        %v1352 = vsel %vm1346, %v1341, %v1333
        %v1353 = vsel %vm1346, %v1343, %v1335
        %v1354 = vsel %vm1346, %v1345, %v1337
        %s1355 = scalar_lea.vmem [#allocation8], 512
        %v1356 = vld [vmem:[%s1355] sm:$0xff]
        %v1357 = vld [vmem:[%s1355 + $0x8] sm:$0xff]
        %v1358 = vld [vmem:[%s1355 + $0x10] sm:$0xff]
        %v1359 = vld [vmem:[%s1355 + $0x18] sm:$0xff]
        %v1360 = vld [vmem:[%s1355 + $0x20] sm:$0xff]
        %v1361 = vld [vmem:[%s1355 + $0x28] sm:$0xff]
        %v1362 = vld [vmem:[%s1355 + $0x30] sm:$0xff]
        %v1363 = vld [vmem:[%s1355 + $0x38] sm:$0xff]
        %v1364 = vmul.f32 %v1347, %v1356
        %v1365 = vmul.f32 %v1351, %v1357
        %v1366 = vmul.f32 %v1348, %v1358
        %v1367 = vmul.f32 %v1352, %v1359
        %v1368 = vmul.f32 %v1349, %v1360
        %v1369 = vmul.f32 %v1353, %v1361
        %v1370 = vmul.f32 %v1350, %v1362
        %v1371 = vmul.f32 %v1354, %v1363
        %v1372 = vpack.c.bf16 %v1366, %v1364
        %v1373 = vpack.c.bf16 %v1367, %v1365
        %v1374 = vpack.c.bf16 %v1370, %v1368
        %v1375 = vpack.c.bf16 %v1371, %v1369
        %s1376 = scalar_lea.vmem [#allocation5], 128
        %v1377 = vld [vmem:[%s1376] sm:$0xf]
        %v1378 = vld [vmem:[%s1376 + $0x4] sm:$0xf]
        %v1379 = vld [vmem:[%s1376 + $0x8] sm:$0xf]
        %v1380 = vld [vmem:[%s1376 + $0xc] sm:$0xf]
        %v1385 = vunpack.c.l.b16 %v1377
        %v1386 = vunpack.c.l.b16 %v1378
        %v1387 = vunpack.c.l.b16 %v1379
        %v1388 = vunpack.c.l.b16 %v1380
        %v1389 = vpack.c.b16 %v1386, %v1385
        %v1390 = vpack.c.b16 %v1388, %v1387
        %v1392 = vsel %vm408, %v1389, 0
        %v1395 = vsel %vm408, %v1390, 0
        %1397 = vmatprep.subr.bf16.mxu0 %v1373
        %1398 = vmatpush1.bf16.msra.mxu0 %v1372
        %1399 = vmatprep.subr.bf16.mxu0 %v1375
        %1400 = vmatpush1.bf16.msra.mxu0 %v1374
        %1401 = vmatprep.subr.bf16.mxu0 0
        %1402 = vmatpush1.bf16.msra.mxu0 0
        %1403 = vmatprep.subr.bf16.mxu0 0
        %1404 = vmatpush1.bf16.msra.mxu0 0
        %1405 = vmatprep.subr.bf16.mxu0 0
        %1406 = vmatpush1.bf16.msra.mxu0 0
        %1407 = vmatprep.subr.bf16.mxu0 0
        %1408 = vmatpush1.bf16.msra.mxu0 0
        %1409 = vmatprep.subr.bf16.mxu0 0
        %1410 = vmatpush1.bf16.msra.mxu0 0
        %1411 = vmatprep.subr.bf16.mxu0 0
        %1412 = vmatpush1.bf16.msra.mxu0 0
        %1413 = vmatprep.subr.bf16.mxu0 0
        %1414 = vmatpush1.bf16.msra.mxu0 0
        %1415 = vmatprep.subr.bf16.mxu0 0
        %1416 = vmatpush1.bf16.msra.mxu0 0
        %1417 = vmatprep.subr.bf16.mxu0 0
        %1418 = vmatpush1.bf16.msra.mxu0 0
        %1419 = vmatprep.subr.bf16.mxu0 0
        %1420 = vmatpush1.bf16.msra.mxu0 0
        %1421 = vmatprep.subr.bf16.mxu0 0
        %1422 = vmatpush1.bf16.msra.mxu0 0
        %1423 = vmatprep.subr.bf16.mxu0 0
        %1424 = vmatpush1.bf16.msra.mxu0 0
        %1425 = vmatprep.subr.bf16.mxu0 0
        %1426 = vmatpush1.bf16.msra.mxu0 0
        %1427 = vmatprep.subr.bf16.mxu0 0
        %1428 = vmatpush1.bf16.msra.mxu0 0
        %1429 = vmatprep.mubr.bf16.mxu0 0
        %1430 = vmatmul.mubr.bf16.gmra.mrb[0].mxu0 %v1392
        %v1431 = vpop.f32.mrb[0].mxu0
        %v1432 = vadd.f32 0.0, %v1431
        %v1433 = vpop.f32.mrb[0].mxu0
        %v1434 = vadd.f32 0.0, %v1433
        %v1435 = vpop.f32.mrb[0].mxu0
        %v1436 = vadd.f32 0.0, %v1435
        %v1437 = vpop.f32.mrb[0].mxu0
        %v1438 = vadd.f32 0.0, %v1437
        %1439 = vmatprep.mubr.bf16.mxu0 0
        %1440 = vmatmul.mubr.bf16.gmra.mrb[0].mxu0 %v1395
        %v1441 = vpop.f32.mrb[0].mxu0
        %v1442 = vadd.f32 0.0, %v1441
        %v1443 = vpop.f32.mrb[0].mxu0
        %v1444 = vadd.f32 0.0, %v1443
        %v1445 = vpop.f32.mrb[0].mxu0
        %v1446 = vadd.f32 0.0, %v1445
        %v1447 = vpop.f32.mrb[0].mxu0
        %v1448 = vadd.f32 0.0, %v1447
        %1449 = vdwg.mxu0
        %v1450 = vadd.f32 %v1322, %v1432
        %v1451 = vadd.f32 %v1323, %v1434
        %v1452 = vadd.f32 %v1324, %v1436
        %v1453 = vadd.f32 %v1325, %v1438
        %v1454 = vadd.f32 %v1326, %v1442
        %v1455 = vadd.f32 %v1327, %v1444
        %v1456 = vadd.f32 %v1328, %v1446
        %v1457 = vadd.f32 %v1329, %v1448
        %v1458 = vmax.f32 %v1450, 0.0
        %v1459 = vmax.f32 %v1451, 0.0
        %v1460 = vmax.f32 %v1452, 0.0
        %v1461 = vmax.f32 %v1453, 0.0
        %v1462 = vmax.f32 %v1454, 0.0
        %v1463 = vmax.f32 %v1455, 0.0
        %v1464 = vmax.f32 %v1456, 0.0
        %v1465 = vmax.f32 %v1457, 0.0
        %v1466 = vld [vmem:[%s4] sm:$0xff]
        %v1467 = vld [vmem:[%s4 + $0x8] sm:$0xff]
        %v1468 = vld [vmem:[%s4 + $0x10] sm:$0xff]
        %v1469 = vld [vmem:[%s4 + $0x18] sm:$0xff]
        %1471 = vset.pattern.permute.xlu0 0
        %1472 = vperm.xlu0 %1471, %v1466
        %v1473 = vpop.permute.xlu0 %1472
        %1476 = vset.pattern.permute.xlu0 0
        %1477 = vperm.xlu0 %1476, %v1467
        %v1478 = vpop.permute.xlu0 %1477
        %1481 = vset.pattern.permute.xlu0 0
        %1482 = vperm.xlu0 %1481, %v1468
        %v1483 = vpop.permute.xlu0 %1482
        %1486 = vset.pattern.permute.xlu0 0
        %1487 = vperm.xlu0 %1486, %v1469
        %v1488 = vpop.permute.xlu0 %1487
        %1490 = vrot.lane.b32.xlu0 %v1458, 17
        %v1491 = vpop.permute.xlu0 %1490
        %1492 = vrot.lane.b32.xlu0 %v1460, 17
        %v1493 = vpop.permute.xlu0 %1492
        %1494 = vrot.lane.b32.xlu0 %v1462, 17
        %v1495 = vpop.permute.xlu0 %1494
        %1496 = vrot.lane.b32.xlu0 %v1464, 17
        %v1497 = vpop.permute.xlu0 %1496
        %1498 = vrot.lane.b32.xlu0 %v1459, 17
        %v1499 = vpop.permute.xlu0 %1498
        %1500 = vrot.lane.b32.xlu0 %v1461, 17
        %v1501 = vpop.permute.xlu0 %1500
        %1502 = vrot.lane.b32.xlu0 %v1463, 17
        %v1503 = vpop.permute.xlu0 %1502
        %1504 = vrot.lane.b32.xlu0 %v1465, 17
        %v1505 = vpop.permute.xlu0 %1504
        %v1506 = vsel %vm365, %v1491, %v1499
        %v1507 = vsel %vm365, %v1493, %v1501
        %v1508 = vsel %vm365, %v1495, %v1503
        %v1509 = vsel %vm365, %v1497, %v1505
        %v1510 = vsel %vm365, %v1499, %v1491
        %v1511 = vsel %vm365, %v1501, %v1493
        %v1512 = vsel %vm365, %v1503, %v1495
        %v1513 = vsel %vm365, %v1505, %v1497
        %v1514 = vmul.f32 %v1510, %v374
        %v1515 = vmul.f32 %v1506, %v375
        %v1516 = vmul.f32 %v1511, %v376
        %v1517 = vmul.f32 %v1507, %v377
        %v1518 = vmul.f32 %v1512, %v378
        %v1519 = vmul.f32 %v1508, %v379
        %v1520 = vmul.f32 %v1513, %v380
        %v1521 = vmul.f32 %v1509, %v381
        %v1522 = vpack.c.bf16 %v1516, %v1514
        %v1523 = vpack.c.bf16 %v1517, %v1515
        %v1524 = vpack.c.bf16 %v1520, %v1518
        %v1525 = vpack.c.bf16 %v1521, %v1519
        %v1526 = vld [vmem:[#allocation7] sm:$0xf]
        %v1527 = vld [vmem:[#allocation7 + $0x4] sm:$0xf]
        %v1528 = vld [vmem:[#allocation7 + $0x8] sm:$0xf]
        %v1529 = vld [vmem:[#allocation7 + $0xc] sm:$0xf]
        %v1534 = vunpack.c.l.b16 %v1526
        %v1535 = vunpack.c.l.b16 %v1527
        %v1536 = vunpack.c.l.b16 %v1528
        %v1537 = vunpack.c.l.b16 %v1529
        %v1538 = vpack.c.b16 %v1535, %v1534
        %v1539 = vpack.c.b16 %v1537, %v1536
        %v1541 = vsel %vm408, %v1538, 0
        %v1544 = vsel %vm408, %v1539, 0
        %1546 = vmatprep.subr.bf16.mxu0 %v1523
        %1547 = vmatpush1.bf16.msra.mxu0 %v1522
        %1548 = vmatprep.subr.bf16.mxu0 %v1525
        %1549 = vmatpush1.bf16.msra.mxu0 %v1524
        %1550 = vmatprep.subr.bf16.mxu0 0
        %1551 = vmatpush1.bf16.msra.mxu0 0
        %1552 = vmatprep.subr.bf16.mxu0 0
        %1553 = vmatpush1.bf16.msra.mxu0 0
        %1554 = vmatprep.subr.bf16.mxu0 0
        %1555 = vmatpush1.bf16.msra.mxu0 0
        %1556 = vmatprep.subr.bf16.mxu0 0
        %1557 = vmatpush1.bf16.msra.mxu0 0
        %1558 = vmatprep.subr.bf16.mxu0 0
        %1559 = vmatpush1.bf16.msra.mxu0 0
        %1560 = vmatprep.subr.bf16.mxu0 0
        %1561 = vmatpush1.bf16.msra.mxu0 0
        %1562 = vmatprep.subr.bf16.mxu0 0
        %1563 = vmatpush1.bf16.msra.mxu0 0
        %1564 = vmatprep.subr.bf16.mxu0 0
        %1565 = vmatpush1.bf16.msra.mxu0 0
        %1566 = vmatprep.subr.bf16.mxu0 0
        %1567 = vmatpush1.bf16.msra.mxu0 0
        %1568 = vmatprep.subr.bf16.mxu0 0
        %1569 = vmatpush1.bf16.msra.mxu0 0
        %1570 = vmatprep.subr.bf16.mxu0 0
        %1571 = vmatpush1.bf16.msra.mxu0 0
        %1572 = vmatprep.subr.bf16.mxu0 0
        %1573 = vmatpush1.bf16.msra.mxu0 0
        %1574 = vmatprep.subr.bf16.mxu0 0
        %1575 = vmatpush1.bf16.msra.mxu0 0
        %1576 = vmatprep.subr.bf16.mxu0 0
        %1577 = vmatpush1.bf16.msra.mxu0 0
        %1578 = vmatprep.mubr.bf16.mxu0 0
        %1579 = vmatmul.mubr.bf16.gmra.mrb[0].mxu0 %v1541
        %v1580 = vpop.f32.mrb[0].mxu0
        %v1581 = vadd.f32 0.0, %v1580
        %v1582 = vpop.f32.mrb[0].mxu0
        %v1583 = vadd.f32 0.0, %v1582
        %v1584 = vpop.f32.mrb[0].mxu0
        %v1585 = vadd.f32 0.0, %v1584
        %v1586 = vpop.f32.mrb[0].mxu0
        %v1587 = vadd.f32 0.0, %v1586
        %1588 = vmatprep.mubr.bf16.mxu0 0
        %1589 = vmatmul.mubr.bf16.gmra.mrb[0].mxu0 %v1544
        %v1590 = vpop.f32.mrb[0].mxu0
        %v1591 = vadd.f32 0.0, %v1590
        %v1592 = vpop.f32.mrb[0].mxu0
        %v1593 = vadd.f32 0.0, %v1592
        %v1594 = vpop.f32.mrb[0].mxu0
        %v1595 = vadd.f32 0.0, %v1594
        %v1596 = vpop.f32.mrb[0].mxu0
        %v1597 = vadd.f32 0.0, %v1596
        %1598 = vdwg.mxu0
        %v1599 = vadd.f32 %v1473, %v1581
        %v1600 = vadd.f32 %v1473, %v1583
        %v1601 = vadd.f32 %v1478, %v1585
        %v1602 = vadd.f32 %v1478, %v1587
        %v1603 = vadd.f32 %v1483, %v1591
        %v1604 = vadd.f32 %v1483, %v1593
        %v1605 = vadd.f32 %v1488, %v1595
        %v1606 = vadd.f32 %v1488, %v1597
        %1607 = vrot.lane.b32.xlu0 %v1458, 16
        %v1608 = vpop.permute.xlu0 %1607
        %1609 = vrot.lane.b32.xlu0 %v1460, 16
        %v1610 = vpop.permute.xlu0 %1609
        %1611 = vrot.lane.b32.xlu0 %v1462, 16
        %v1612 = vpop.permute.xlu0 %1611
        %1613 = vrot.lane.b32.xlu0 %v1464, 16
        %v1614 = vpop.permute.xlu0 %1613
        %1615 = vrot.lane.b32.xlu0 %v1459, 16
        %v1616 = vpop.permute.xlu0 %1615
        %1617 = vrot.lane.b32.xlu0 %v1461, 16
        %v1618 = vpop.permute.xlu0 %1617
        %1619 = vrot.lane.b32.xlu0 %v1463, 16
        %v1620 = vpop.permute.xlu0 %1619
        %1621 = vrot.lane.b32.xlu0 %v1465, 16
        %v1622 = vpop.permute.xlu0 %1621
        %v1623 = vsel %vm492, %v1608, %v1616
        %v1624 = vsel %vm492, %v1610, %v1618
        %v1625 = vsel %vm492, %v1612, %v1620
        %v1626 = vsel %vm492, %v1614, %v1622
        %v1627 = vsel %vm492, %v1616, %v1608
        %v1628 = vsel %vm492, %v1618, %v1610
        %v1629 = vsel %vm492, %v1620, %v1612
        %v1630 = vsel %vm492, %v1622, %v1614
        %v1631 = vmul.f32 %v1627, %v502
        %v1632 = vmul.f32 %v1623, %v503
        %v1633 = vmul.f32 %v1628, %v504
        %v1634 = vmul.f32 %v1624, %v505
        %v1635 = vmul.f32 %v1629, %v506
        %v1636 = vmul.f32 %v1625, %v507
        %v1637 = vmul.f32 %v1630, %v508
        %v1638 = vmul.f32 %v1626, %v509
        %v1639 = vpack.c.bf16 %v1633, %v1631
        %v1640 = vpack.c.bf16 %v1634, %v1632
        %v1641 = vpack.c.bf16 %v1637, %v1635
        %v1642 = vpack.c.bf16 %v1638, %v1636
        %s1643 = scalar_lea.vmem [#allocation7], 16
        %v1644 = vld [vmem:[%s1643] sm:$0xf]
        %v1645 = vld [vmem:[%s1643 + $0x4] sm:$0xf]
        %v1646 = vld [vmem:[%s1643 + $0x8] sm:$0xf]
        %v1647 = vld [vmem:[%s1643 + $0xc] sm:$0xf]
        %v1652 = vunpack.c.l.b16 %v1644
        %v1653 = vunpack.c.l.b16 %v1645
        %v1654 = vunpack.c.l.b16 %v1646
        %v1655 = vunpack.c.l.b16 %v1647
        %v1656 = vpack.c.b16 %v1653, %v1652
        %v1657 = vpack.c.b16 %v1655, %v1654
        %v1659 = vsel %vm408, %v1656, 0
        %v1662 = vsel %vm408, %v1657, 0
        %1664 = vmatprep.subr.bf16.mxu0 %v1640
        %1665 = vmatpush1.bf16.msra.mxu0 %v1639
        %1666 = vmatprep.subr.bf16.mxu0 %v1642
        %1667 = vmatpush1.bf16.msra.mxu0 %v1641
        %1668 = vmatprep.subr.bf16.mxu0 0
        %1669 = vmatpush1.bf16.msra.mxu0 0
        %1670 = vmatprep.subr.bf16.mxu0 0
        %1671 = vmatpush1.bf16.msra.mxu0 0
        %1672 = vmatprep.subr.bf16.mxu0 0
        %1673 = vmatpush1.bf16.msra.mxu0 0
        %1674 = vmatprep.subr.bf16.mxu0 0
        %1675 = vmatpush1.bf16.msra.mxu0 0
        %1676 = vmatprep.subr.bf16.mxu0 0
        %1677 = vmatpush1.bf16.msra.mxu0 0
        %1678 = vmatprep.subr.bf16.mxu0 0
        %1679 = vmatpush1.bf16.msra.mxu0 0
        %1680 = vmatprep.subr.bf16.mxu0 0
        %1681 = vmatpush1.bf16.msra.mxu0 0
        %1682 = vmatprep.subr.bf16.mxu0 0
        %1683 = vmatpush1.bf16.msra.mxu0 0
        %1684 = vmatprep.subr.bf16.mxu0 0
        %1685 = vmatpush1.bf16.msra.mxu0 0
        %1686 = vmatprep.subr.bf16.mxu0 0
        %1687 = vmatpush1.bf16.msra.mxu0 0
        %1688 = vmatprep.subr.bf16.mxu0 0
        %1689 = vmatpush1.bf16.msra.mxu0 0
        %1690 = vmatprep.subr.bf16.mxu0 0
        %1691 = vmatpush1.bf16.msra.mxu0 0
        %1692 = vmatprep.subr.bf16.mxu0 0
        %1693 = vmatpush1.bf16.msra.mxu0 0
        %1694 = vmatprep.subr.bf16.mxu0 0
        %1695 = vmatpush1.bf16.msra.mxu0 0
        %1696 = vmatprep.mubr.bf16.mxu0 0
        %1697 = vmatmul.mubr.bf16.gmra.mrb[0].mxu0 %v1659
        %v1698 = vpop.f32.mrb[0].mxu0
        %v1699 = vadd.f32 0.0, %v1698
        %v1700 = vpop.f32.mrb[0].mxu0
        %v1701 = vadd.f32 0.0, %v1700
        %v1702 = vpop.f32.mrb[0].mxu0
        %v1703 = vadd.f32 0.0, %v1702
        %v1704 = vpop.f32.mrb[0].mxu0
        %v1705 = vadd.f32 0.0, %v1704
        %1706 = vmatprep.mubr.bf16.mxu0 0
        %1707 = vmatmul.mubr.bf16.gmra.mrb[0].mxu0 %v1662
        %v1708 = vpop.f32.mrb[0].mxu0
        %v1709 = vadd.f32 0.0, %v1708
        %v1710 = vpop.f32.mrb[0].mxu0
        %v1711 = vadd.f32 0.0, %v1710
        %v1712 = vpop.f32.mrb[0].mxu0
        %v1713 = vadd.f32 0.0, %v1712
        %v1714 = vpop.f32.mrb[0].mxu0
        %v1715 = vadd.f32 0.0, %v1714
        %1716 = vdwg.mxu0
        %v1717 = vadd.f32 %v1599, %v1699
        %v1718 = vadd.f32 %v1600, %v1701
        %v1719 = vadd.f32 %v1601, %v1703
        %v1720 = vadd.f32 %v1602, %v1705
        %v1721 = vadd.f32 %v1603, %v1709
        %v1722 = vadd.f32 %v1604, %v1711
        %v1723 = vadd.f32 %v1605, %v1713
        %v1724 = vadd.f32 %v1606, %v1715
        %1725 = vrot.lane.b32.xlu0 %v1458, 15
        %v1726 = vpop.permute.xlu0 %1725
        %1727 = vrot.lane.b32.xlu0 %v1460, 15
        %v1728 = vpop.permute.xlu0 %1727
        %1729 = vrot.lane.b32.xlu0 %v1462, 15
        %v1730 = vpop.permute.xlu0 %1729
        %1731 = vrot.lane.b32.xlu0 %v1464, 15
        %v1732 = vpop.permute.xlu0 %1731
        %1733 = vrot.lane.b32.xlu0 %v1459, 15
        %v1734 = vpop.permute.xlu0 %1733
        %1735 = vrot.lane.b32.xlu0 %v1461, 15
        %v1736 = vpop.permute.xlu0 %1735
        %1737 = vrot.lane.b32.xlu0 %v1463, 15
        %v1738 = vpop.permute.xlu0 %1737
        %1739 = vrot.lane.b32.xlu0 %v1465, 15
        %v1740 = vpop.permute.xlu0 %1739
        %v1741 = vsel %vm620, %v1726, %v1734
        %v1742 = vsel %vm620, %v1728, %v1736
        %v1743 = vsel %vm620, %v1730, %v1738
        %v1744 = vsel %vm620, %v1732, %v1740
        %v1745 = vsel %vm620, %v1734, %v1726
        %v1746 = vsel %vm620, %v1736, %v1728
        %v1747 = vsel %vm620, %v1738, %v1730
        %v1748 = vsel %vm620, %v1740, %v1732
        %v1749 = vmul.f32 %v1745, %v630
        %v1750 = vmul.f32 %v1741, %v631
        %v1751 = vmul.f32 %v1746, %v632
        %v1752 = vmul.f32 %v1742, %v633
        %v1753 = vmul.f32 %v1747, %v634
        %v1754 = vmul.f32 %v1743, %v635
        %v1755 = vmul.f32 %v1748, %v636
        %v1756 = vmul.f32 %v1744, %v637
        %v1757 = vpack.c.bf16 %v1751, %v1749
        %v1758 = vpack.c.bf16 %v1752, %v1750
        %v1759 = vpack.c.bf16 %v1755, %v1753
        %v1760 = vpack.c.bf16 %v1756, %v1754
        %s1761 = scalar_lea.vmem [#allocation7], 32
        %v1762 = vld [vmem:[%s1761] sm:$0xf]
        %v1763 = vld [vmem:[%s1761 + $0x4] sm:$0xf]
        %v1764 = vld [vmem:[%s1761 + $0x8] sm:$0xf]
        %v1765 = vld [vmem:[%s1761 + $0xc] sm:$0xf]
        %v1770 = vunpack.c.l.b16 %v1762
        %v1771 = vunpack.c.l.b16 %v1763
        %v1772 = vunpack.c.l.b16 %v1764
        %v1773 = vunpack.c.l.b16 %v1765
        %v1774 = vpack.c.b16 %v1771, %v1770
        %v1775 = vpack.c.b16 %v1773, %v1772
        %v1777 = vsel %vm408, %v1774, 0
        %v1780 = vsel %vm408, %v1775, 0
        %1782 = vmatprep.subr.bf16.mxu0 %v1758
        %1783 = vmatpush1.bf16.msra.mxu0 %v1757
        %1784 = vmatprep.subr.bf16.mxu0 %v1760
        %1785 = vmatpush1.bf16.msra.mxu0 %v1759
        %1786 = vmatprep.subr.bf16.mxu0 0
        %1787 = vmatpush1.bf16.msra.mxu0 0
        %1788 = vmatprep.subr.bf16.mxu0 0
        %1789 = vmatpush1.bf16.msra.mxu0 0
        %1790 = vmatprep.subr.bf16.mxu0 0
        %1791 = vmatpush1.bf16.msra.mxu0 0
        %1792 = vmatprep.subr.bf16.mxu0 0
        %1793 = vmatpush1.bf16.msra.mxu0 0
        %1794 = vmatprep.subr.bf16.mxu0 0
        %1795 = vmatpush1.bf16.msra.mxu0 0
        %1796 = vmatprep.subr.bf16.mxu0 0
        %1797 = vmatpush1.bf16.msra.mxu0 0
        %1798 = vmatprep.subr.bf16.mxu0 0
        %1799 = vmatpush1.bf16.msra.mxu0 0
        %1800 = vmatprep.subr.bf16.mxu0 0
        %1801 = vmatpush1.bf16.msra.mxu0 0
        %1802 = vmatprep.subr.bf16.mxu0 0
        %1803 = vmatpush1.bf16.msra.mxu0 0
        %1804 = vmatprep.subr.bf16.mxu0 0
        %1805 = vmatpush1.bf16.msra.mxu0 0
        %1806 = vmatprep.subr.bf16.mxu0 0
        %1807 = vmatpush1.bf16.msra.mxu0 0
        %1808 = vmatprep.subr.bf16.mxu0 0
        %1809 = vmatpush1.bf16.msra.mxu0 0
        %1810 = vmatprep.subr.bf16.mxu0 0
        %1811 = vmatpush1.bf16.msra.mxu0 0
        %1812 = vmatprep.subr.bf16.mxu0 0
        %1813 = vmatpush1.bf16.msra.mxu0 0
        %1814 = vmatprep.mubr.bf16.mxu0 0
        %1815 = vmatmul.mubr.bf16.gmra.mrb[0].mxu0 %v1777
        %v1816 = vpop.f32.mrb[0].mxu0
        %v1817 = vadd.f32 0.0, %v1816
        %v1818 = vpop.f32.mrb[0].mxu0
        %v1819 = vadd.f32 0.0, %v1818
        %v1820 = vpop.f32.mrb[0].mxu0
        %v1821 = vadd.f32 0.0, %v1820
        %v1822 = vpop.f32.mrb[0].mxu0
        %v1823 = vadd.f32 0.0, %v1822
        %1824 = vmatprep.mubr.bf16.mxu0 0
        %1825 = vmatmul.mubr.bf16.gmra.mrb[0].mxu0 %v1780
        %v1826 = vpop.f32.mrb[0].mxu0
        %v1827 = vadd.f32 0.0, %v1826
        %v1828 = vpop.f32.mrb[0].mxu0
        %v1829 = vadd.f32 0.0, %v1828
        %v1830 = vpop.f32.mrb[0].mxu0
        %v1831 = vadd.f32 0.0, %v1830
        %v1832 = vpop.f32.mrb[0].mxu0
        %v1833 = vadd.f32 0.0, %v1832
        %1834 = vdwg.mxu0
        %v1835 = vadd.f32 %v1717, %v1817
        %v1836 = vadd.f32 %v1718, %v1819
        %v1837 = vadd.f32 %v1719, %v1821
        %v1838 = vadd.f32 %v1720, %v1823
        %v1839 = vadd.f32 %v1721, %v1827
        %v1840 = vadd.f32 %v1722, %v1829
        %v1841 = vadd.f32 %v1723, %v1831
        %v1842 = vadd.f32 %v1724, %v1833
        %1843 = vrot.lane.b32.xlu0 %v1458, 1
        %v1844 = vpop.permute.xlu0 %1843
        %1845 = vrot.lane.b32.xlu0 %v1460, 1
        %v1846 = vpop.permute.xlu0 %1845
        %1847 = vrot.lane.b32.xlu0 %v1462, 1
        %v1848 = vpop.permute.xlu0 %1847
        %1849 = vrot.lane.b32.xlu0 %v1464, 1
        %v1850 = vpop.permute.xlu0 %1849
        %1851 = vrot.lane.b32.xlu0 %v1459, 1
        %v1852 = vpop.permute.xlu0 %1851
        %1853 = vrot.lane.b32.xlu0 %v1461, 1
        %v1854 = vpop.permute.xlu0 %1853
        %1855 = vrot.lane.b32.xlu0 %v1463, 1
        %v1856 = vpop.permute.xlu0 %1855
        %1857 = vrot.lane.b32.xlu0 %v1465, 1
        %v1858 = vpop.permute.xlu0 %1857
        %v1859 = vsel %vm748, %v1844, %v1852
        %v1860 = vsel %vm748, %v1846, %v1854
        %v1861 = vsel %vm748, %v1848, %v1856
        %v1862 = vsel %vm748, %v1850, %v1858
        %v1863 = vsel %vm748, %v1852, %v1844
        %v1864 = vsel %vm748, %v1854, %v1846
        %v1865 = vsel %vm748, %v1856, %v1848
        %v1866 = vsel %vm748, %v1858, %v1850
        %v1867 = vmul.f32 %v1863, %v758
        %v1868 = vmul.f32 %v1859, %v759
        %v1869 = vmul.f32 %v1864, %v760
        %v1870 = vmul.f32 %v1860, %v761
        %v1871 = vmul.f32 %v1865, %v762
        %v1872 = vmul.f32 %v1861, %v763
        %v1873 = vmul.f32 %v1866, %v764
        %v1874 = vmul.f32 %v1862, %v765
        %v1875 = vpack.c.bf16 %v1869, %v1867
        %v1876 = vpack.c.bf16 %v1870, %v1868
        %v1877 = vpack.c.bf16 %v1873, %v1871
        %v1878 = vpack.c.bf16 %v1874, %v1872
        %s1879 = scalar_lea.vmem [#allocation7], 48
        %v1880 = vld [vmem:[%s1879] sm:$0xf]
        %v1881 = vld [vmem:[%s1879 + $0x4] sm:$0xf]
        %v1882 = vld [vmem:[%s1879 + $0x8] sm:$0xf]
        %v1883 = vld [vmem:[%s1879 + $0xc] sm:$0xf]
        %v1888 = vunpack.c.l.b16 %v1880
        %v1889 = vunpack.c.l.b16 %v1881
        %v1890 = vunpack.c.l.b16 %v1882
        %v1891 = vunpack.c.l.b16 %v1883
        %v1892 = vpack.c.b16 %v1889, %v1888
        %v1893 = vpack.c.b16 %v1891, %v1890
        %v1895 = vsel %vm408, %v1892, 0
        %v1898 = vsel %vm408, %v1893, 0
        %1900 = vmatprep.subr.bf16.mxu0 %v1876
        %1901 = vmatpush1.bf16.msra.mxu0 %v1875
        %1902 = vmatprep.subr.bf16.mxu0 %v1878
        %1903 = vmatpush1.bf16.msra.mxu0 %v1877
        %1904 = vmatprep.subr.bf16.mxu0 0
        %1905 = vmatpush1.bf16.msra.mxu0 0
        %1906 = vmatprep.subr.bf16.mxu0 0
        %1907 = vmatpush1.bf16.msra.mxu0 0
        %1908 = vmatprep.subr.bf16.mxu0 0
        %1909 = vmatpush1.bf16.msra.mxu0 0
        %1910 = vmatprep.subr.bf16.mxu0 0
        %1911 = vmatpush1.bf16.msra.mxu0 0
        %1912 = vmatprep.subr.bf16.mxu0 0
        %1913 = vmatpush1.bf16.msra.mxu0 0
        %1914 = vmatprep.subr.bf16.mxu0 0
        %1915 = vmatpush1.bf16.msra.mxu0 0
        %1916 = vmatprep.subr.bf16.mxu0 0
        %1917 = vmatpush1.bf16.msra.mxu0 0
        %1918 = vmatprep.subr.bf16.mxu0 0
        %1919 = vmatpush1.bf16.msra.mxu0 0
        %1920 = vmatprep.subr.bf16.mxu0 0
        %1921 = vmatpush1.bf16.msra.mxu0 0
        %1922 = vmatprep.subr.bf16.mxu0 0
        %1923 = vmatpush1.bf16.msra.mxu0 0
        %1924 = vmatprep.subr.bf16.mxu0 0
        %1925 = vmatpush1.bf16.msra.mxu0 0
        %1926 = vmatprep.subr.bf16.mxu0 0
        %1927 = vmatpush1.bf16.msra.mxu0 0
        %1928 = vmatprep.subr.bf16.mxu0 0
        %1929 = vmatpush1.bf16.msra.mxu0 0
        %1930 = vmatprep.subr.bf16.mxu0 0
        %1931 = vmatpush1.bf16.msra.mxu0 0
        %1932 = vmatprep.mubr.bf16.mxu0 0
        %1933 = vmatmul.mubr.bf16.gmra.mrb[0].mxu0 %v1895
        %v1934 = vpop.f32.mrb[0].mxu0
        %v1935 = vadd.f32 0.0, %v1934
        %v1936 = vpop.f32.mrb[0].mxu0
        %v1937 = vadd.f32 0.0, %v1936
        %v1938 = vpop.f32.mrb[0].mxu0
        %v1939 = vadd.f32 0.0, %v1938
        %v1940 = vpop.f32.mrb[0].mxu0
        %v1941 = vadd.f32 0.0, %v1940
        %1942 = vmatprep.mubr.bf16.mxu0 0
        %1943 = vmatmul.mubr.bf16.gmra.mrb[0].mxu0 %v1898
        %v1944 = vpop.f32.mrb[0].mxu0
        %v1945 = vadd.f32 0.0, %v1944
        %v1946 = vpop.f32.mrb[0].mxu0
        %v1947 = vadd.f32 0.0, %v1946
        %v1948 = vpop.f32.mrb[0].mxu0
        %v1949 = vadd.f32 0.0, %v1948
        %v1950 = vpop.f32.mrb[0].mxu0
        %v1951 = vadd.f32 0.0, %v1950
        %1952 = vdwg.mxu0
        %v1953 = vadd.f32 %v1835, %v1935
        %v1954 = vadd.f32 %v1836, %v1937
        %v1955 = vadd.f32 %v1837, %v1939
        %v1956 = vadd.f32 %v1838, %v1941
        %v1957 = vadd.f32 %v1839, %v1945
        %v1958 = vadd.f32 %v1840, %v1947
        %v1959 = vadd.f32 %v1841, %v1949
        %v1960 = vadd.f32 %v1842, %v1951
        %v1961 = vpack.c.bf16 %v1460, %v1458
        %v1962 = vpack.c.bf16 %v1461, %v1459
        %v1963 = vpack.c.bf16 %v1464, %v1462
        %v1964 = vpack.c.bf16 %v1465, %v1463
        %s1965 = scalar_lea.vmem [#allocation7], 64
        %v1966 = vld [vmem:[%s1965] sm:$0xf]
        %v1967 = vld [vmem:[%s1965 + $0x4] sm:$0xf]
        %v1968 = vld [vmem:[%s1965 + $0x8] sm:$0xf]
        %v1969 = vld [vmem:[%s1965 + $0xc] sm:$0xf]
        %v1974 = vunpack.c.l.b16 %v1966
        %v1975 = vunpack.c.l.b16 %v1967
        %v1976 = vunpack.c.l.b16 %v1968
        %v1977 = vunpack.c.l.b16 %v1969
        %v1978 = vpack.c.b16 %v1975, %v1974
        %v1979 = vpack.c.b16 %v1977, %v1976
        %v1981 = vsel %vm408, %v1978, 0
        %v1984 = vsel %vm408, %v1979, 0
        %1986 = vmatprep.subr.bf16.mxu0 %v1962
        %1987 = vmatpush1.bf16.msra.mxu0 %v1961
        %1988 = vmatprep.subr.bf16.mxu0 %v1964
        %1989 = vmatpush1.bf16.msra.mxu0 %v1963
        %1990 = vmatprep.subr.bf16.mxu0 0
        %1991 = vmatpush1.bf16.msra.mxu0 0
        %1992 = vmatprep.subr.bf16.mxu0 0
        %1993 = vmatpush1.bf16.msra.mxu0 0
        %1994 = vmatprep.subr.bf16.mxu0 0
        %1995 = vmatpush1.bf16.msra.mxu0 0
        %1996 = vmatprep.subr.bf16.mxu0 0
        %1997 = vmatpush1.bf16.msra.mxu0 0
        %1998 = vmatprep.subr.bf16.mxu0 0
        %1999 = vmatpush1.bf16.msra.mxu0 0
        %2000 = vmatprep.subr.bf16.mxu0 0
        %2001 = vmatpush1.bf16.msra.mxu0 0
        %2002 = vmatprep.subr.bf16.mxu0 0
        %2003 = vmatpush1.bf16.msra.mxu0 0
        %2004 = vmatprep.subr.bf16.mxu0 0
        %2005 = vmatpush1.bf16.msra.mxu0 0
        %2006 = vmatprep.subr.bf16.mxu0 0
        %2007 = vmatpush1.bf16.msra.mxu0 0
        %2008 = vmatprep.subr.bf16.mxu0 0
        %2009 = vmatpush1.bf16.msra.mxu0 0
        %2010 = vmatprep.subr.bf16.mxu0 0
        %2011 = vmatpush1.bf16.msra.mxu0 0
        %2012 = vmatprep.subr.bf16.mxu0 0
        %2013 = vmatpush1.bf16.msra.mxu0 0
        %2014 = vmatprep.subr.bf16.mxu0 0
        %2015 = vmatpush1.bf16.msra.mxu0 0
        %2016 = vmatprep.subr.bf16.mxu0 0
        %2017 = vmatpush1.bf16.msra.mxu0 0
        %2018 = vmatprep.mubr.bf16.mxu0 0
        %2019 = vmatmul.mubr.bf16.gmra.mrb[0].mxu0 %v1981
        %v2020 = vpop.f32.mrb[0].mxu0
        %v2021 = vadd.f32 0.0, %v2020
        %v2022 = vpop.f32.mrb[0].mxu0
        %v2023 = vadd.f32 0.0, %v2022
        %v2024 = vpop.f32.mrb[0].mxu0
        %v2025 = vadd.f32 0.0, %v2024
        %v2026 = vpop.f32.mrb[0].mxu0
        %v2027 = vadd.f32 0.0, %v2026
        %2028 = vmatprep.mubr.bf16.mxu0 0
        %2029 = vmatmul.mubr.bf16.gmra.mrb[0].mxu0 %v1984
        %v2030 = vpop.f32.mrb[0].mxu0
        %v2031 = vadd.f32 0.0, %v2030
        %v2032 = vpop.f32.mrb[0].mxu0
        %v2033 = vadd.f32 0.0, %v2032
        %v2034 = vpop.f32.mrb[0].mxu0
        %v2035 = vadd.f32 0.0, %v2034
        %v2036 = vpop.f32.mrb[0].mxu0
        %v2037 = vadd.f32 0.0, %v2036
        %2038 = vdwg.mxu0
        %v2039 = vadd.f32 %v1953, %v2021
        %v2040 = vadd.f32 %v1954, %v2023
        %v2041 = vadd.f32 %v1955, %v2025
        %v2042 = vadd.f32 %v1956, %v2027
        %v2043 = vadd.f32 %v1957, %v2031
        %v2044 = vadd.f32 %v1958, %v2033
        %v2045 = vadd.f32 %v1959, %v2035
        %v2046 = vadd.f32 %v1960, %v2037
        %2047 = vrot.lane.b32.xlu0 %v1458, 127
        %v2048 = vpop.permute.xlu0 %2047
        %2049 = vrot.lane.b32.xlu0 %v1460, 127
        %v2050 = vpop.permute.xlu0 %2049
        %2051 = vrot.lane.b32.xlu0 %v1462, 127
        %v2052 = vpop.permute.xlu0 %2051
        %2053 = vrot.lane.b32.xlu0 %v1464, 127
        %v2054 = vpop.permute.xlu0 %2053
        %2055 = vrot.lane.b32.xlu0 %v1459, 127
        %v2056 = vpop.permute.xlu0 %2055
        %2057 = vrot.lane.b32.xlu0 %v1461, 127
        %v2058 = vpop.permute.xlu0 %2057
        %2059 = vrot.lane.b32.xlu0 %v1463, 127
        %v2060 = vpop.permute.xlu0 %2059
        %2061 = vrot.lane.b32.xlu0 %v1465, 127
        %v2062 = vpop.permute.xlu0 %2061
        %v2063 = vsel %vm962, %v2048, %v2056
        %v2064 = vsel %vm962, %v2050, %v2058
        %v2065 = vsel %vm962, %v2052, %v2060
        %v2066 = vsel %vm962, %v2054, %v2062
        %v2067 = vsel %vm962, %v2056, %v2048
        %v2068 = vsel %vm962, %v2058, %v2050
        %v2069 = vsel %vm962, %v2060, %v2052
        %v2070 = vsel %vm962, %v2062, %v2054
        %v2071 = vmul.f32 %v2063, %v972
        %v2072 = vmul.f32 %v2067, %v973
        %v2073 = vmul.f32 %v2064, %v974
        %v2074 = vmul.f32 %v2068, %v975
        %v2075 = vmul.f32 %v2065, %v976
        %v2076 = vmul.f32 %v2069, %v977
        %v2077 = vmul.f32 %v2066, %v978
        %v2078 = vmul.f32 %v2070, %v979
        %v2079 = vpack.c.bf16 %v2073, %v2071
        %v2080 = vpack.c.bf16 %v2074, %v2072
        %v2081 = vpack.c.bf16 %v2077, %v2075
        %v2082 = vpack.c.bf16 %v2078, %v2076
        %s2083 = scalar_lea.vmem [#allocation7], 80
        %v2084 = vld [vmem:[%s2083] sm:$0xf]
        %v2085 = vld [vmem:[%s2083 + $0x4] sm:$0xf]
        %v2086 = vld [vmem:[%s2083 + $0x8] sm:$0xf]
        %v2087 = vld [vmem:[%s2083 + $0xc] sm:$0xf]
        %v2092 = vunpack.c.l.b16 %v2084
        %v2093 = vunpack.c.l.b16 %v2085
        %v2094 = vunpack.c.l.b16 %v2086
        %v2095 = vunpack.c.l.b16 %v2087
        %v2096 = vpack.c.b16 %v2093, %v2092
        %v2097 = vpack.c.b16 %v2095, %v2094
        %v2099 = vsel %vm408, %v2096, 0
        %v2102 = vsel %vm408, %v2097, 0
        %2104 = vmatprep.subr.bf16.mxu0 %v2080
        %2105 = vmatpush1.bf16.msra.mxu0 %v2079
        %2106 = vmatprep.subr.bf16.mxu0 %v2082
        %2107 = vmatpush1.bf16.msra.mxu0 %v2081
        %2108 = vmatprep.subr.bf16.mxu0 0
        %2109 = vmatpush1.bf16.msra.mxu0 0
        %2110 = vmatprep.subr.bf16.mxu0 0
        %2111 = vmatpush1.bf16.msra.mxu0 0
        %2112 = vmatprep.subr.bf16.mxu0 0
        %2113 = vmatpush1.bf16.msra.mxu0 0
        %2114 = vmatprep.subr.bf16.mxu0 0
        %2115 = vmatpush1.bf16.msra.mxu0 0
        %2116 = vmatprep.subr.bf16.mxu0 0
        %2117 = vmatpush1.bf16.msra.mxu0 0
        %2118 = vmatprep.subr.bf16.mxu0 0
        %2119 = vmatpush1.bf16.msra.mxu0 0
        %2120 = vmatprep.subr.bf16.mxu0 0
        %2121 = vmatpush1.bf16.msra.mxu0 0
        %2122 = vmatprep.subr.bf16.mxu0 0
        %2123 = vmatpush1.bf16.msra.mxu0 0
        %2124 = vmatprep.subr.bf16.mxu0 0
        %2125 = vmatpush1.bf16.msra.mxu0 0
        %2126 = vmatprep.subr.bf16.mxu0 0
        %2127 = vmatpush1.bf16.msra.mxu0 0
        %2128 = vmatprep.subr.bf16.mxu0 0
        %2129 = vmatpush1.bf16.msra.mxu0 0
        %2130 = vmatprep.subr.bf16.mxu0 0
        %2131 = vmatpush1.bf16.msra.mxu0 0
        %2132 = vmatprep.subr.bf16.mxu0 0
        %2133 = vmatpush1.bf16.msra.mxu0 0
        %2134 = vmatprep.subr.bf16.mxu0 0
        %2135 = vmatpush1.bf16.msra.mxu0 0
        %2136 = vmatprep.mubr.bf16.mxu0 0
        %2137 = vmatmul.mubr.bf16.gmra.mrb[0].mxu0 %v2099
        %v2138 = vpop.f32.mrb[0].mxu0
        %v2139 = vadd.f32 0.0, %v2138
        %v2140 = vpop.f32.mrb[0].mxu0
        %v2141 = vadd.f32 0.0, %v2140
        %v2142 = vpop.f32.mrb[0].mxu0
        %v2143 = vadd.f32 0.0, %v2142
        %v2144 = vpop.f32.mrb[0].mxu0
        %v2145 = vadd.f32 0.0, %v2144
        %2146 = vmatprep.mubr.bf16.mxu0 0
        %2147 = vmatmul.mubr.bf16.gmra.mrb[0].mxu0 %v2102
        %v2148 = vpop.f32.mrb[0].mxu0
        %v2149 = vadd.f32 0.0, %v2148
        %v2150 = vpop.f32.mrb[0].mxu0
        %v2151 = vadd.f32 0.0, %v2150
        %v2152 = vpop.f32.mrb[0].mxu0
        %v2153 = vadd.f32 0.0, %v2152
        %v2154 = vpop.f32.mrb[0].mxu0
        %v2155 = vadd.f32 0.0, %v2154
        %2156 = vdwg.mxu0
        %v2157 = vadd.f32 %v2039, %v2139
        %v2158 = vadd.f32 %v2040, %v2141
        %v2159 = vadd.f32 %v2041, %v2143
        %v2160 = vadd.f32 %v2042, %v2145
        %v2161 = vadd.f32 %v2043, %v2149
        %v2162 = vadd.f32 %v2044, %v2151
        %v2163 = vadd.f32 %v2045, %v2153
        %v2164 = vadd.f32 %v2046, %v2155
        %2165 = vrot.lane.b32.xlu0 %v1458, 113
        %v2166 = vpop.permute.xlu0 %2165
        %2167 = vrot.lane.b32.xlu0 %v1460, 113
        %v2168 = vpop.permute.xlu0 %2167
        %2169 = vrot.lane.b32.xlu0 %v1462, 113
        %v2170 = vpop.permute.xlu0 %2169
        %2171 = vrot.lane.b32.xlu0 %v1464, 113
        %v2172 = vpop.permute.xlu0 %2171
        %2173 = vrot.lane.b32.xlu0 %v1459, 113
        %v2174 = vpop.permute.xlu0 %2173
        %2175 = vrot.lane.b32.xlu0 %v1461, 113
        %v2176 = vpop.permute.xlu0 %2175
        %2177 = vrot.lane.b32.xlu0 %v1463, 113
        %v2178 = vpop.permute.xlu0 %2177
        %2179 = vrot.lane.b32.xlu0 %v1465, 113
        %v2180 = vpop.permute.xlu0 %2179
        %v2181 = vsel %vm1090, %v2166, %v2174
        %v2182 = vsel %vm1090, %v2168, %v2176
        %v2183 = vsel %vm1090, %v2170, %v2178
        %v2184 = vsel %vm1090, %v2172, %v2180
        %v2185 = vsel %vm1090, %v2174, %v2166
        %v2186 = vsel %vm1090, %v2176, %v2168
        %v2187 = vsel %vm1090, %v2178, %v2170
        %v2188 = vsel %vm1090, %v2180, %v2172
        %v2189 = vmul.f32 %v2181, %v1100
        %v2190 = vmul.f32 %v2185, %v1101
        %v2191 = vmul.f32 %v2182, %v1102
        %v2192 = vmul.f32 %v2186, %v1103
        %v2193 = vmul.f32 %v2183, %v1104
        %v2194 = vmul.f32 %v2187, %v1105
        %v2195 = vmul.f32 %v2184, %v1106
        %v2196 = vmul.f32 %v2188, %v1107
        %v2197 = vpack.c.bf16 %v2191, %v2189
        %v2198 = vpack.c.bf16 %v2192, %v2190
        %v2199 = vpack.c.bf16 %v2195, %v2193
        %v2200 = vpack.c.bf16 %v2196, %v2194
        %s2201 = scalar_lea.vmem [#allocation7], 96
        %v2202 = vld [vmem:[%s2201] sm:$0xf]
        %v2203 = vld [vmem:[%s2201 + $0x4] sm:$0xf]
        %v2204 = vld [vmem:[%s2201 + $0x8] sm:$0xf]
        %v2205 = vld [vmem:[%s2201 + $0xc] sm:$0xf]
        %v2210 = vunpack.c.l.b16 %v2202
        %v2211 = vunpack.c.l.b16 %v2203
        %v2212 = vunpack.c.l.b16 %v2204
        %v2213 = vunpack.c.l.b16 %v2205
        %v2214 = vpack.c.b16 %v2211, %v2210
        %v2215 = vpack.c.b16 %v2213, %v2212
        %v2217 = vsel %vm408, %v2214, 0
        %v2220 = vsel %vm408, %v2215, 0
        %2222 = vmatprep.subr.bf16.mxu0 %v2198
        %2223 = vmatpush1.bf16.msra.mxu0 %v2197
        %2224 = vmatprep.subr.bf16.mxu0 %v2200
        %2225 = vmatpush1.bf16.msra.mxu0 %v2199
        %2226 = vmatprep.subr.bf16.mxu0 0
        %2227 = vmatpush1.bf16.msra.mxu0 0
        %2228 = vmatprep.subr.bf16.mxu0 0
        %2229 = vmatpush1.bf16.msra.mxu0 0
        %2230 = vmatprep.subr.bf16.mxu0 0
        %2231 = vmatpush1.bf16.msra.mxu0 0
        %2232 = vmatprep.subr.bf16.mxu0 0
        %2233 = vmatpush1.bf16.msra.mxu0 0
        %2234 = vmatprep.subr.bf16.mxu0 0
        %2235 = vmatpush1.bf16.msra.mxu0 0
        %2236 = vmatprep.subr.bf16.mxu0 0
        %2237 = vmatpush1.bf16.msra.mxu0 0
        %2238 = vmatprep.subr.bf16.mxu0 0
        %2239 = vmatpush1.bf16.msra.mxu0 0
        %2240 = vmatprep.subr.bf16.mxu0 0
        %2241 = vmatpush1.bf16.msra.mxu0 0
        %2242 = vmatprep.subr.bf16.mxu0 0
        %2243 = vmatpush1.bf16.msra.mxu0 0
        %2244 = vmatprep.subr.bf16.mxu0 0
        %2245 = vmatpush1.bf16.msra.mxu0 0
        %2246 = vmatprep.subr.bf16.mxu0 0
        %2247 = vmatpush1.bf16.msra.mxu0 0
        %2248 = vmatprep.subr.bf16.mxu0 0
        %2249 = vmatpush1.bf16.msra.mxu0 0
        %2250 = vmatprep.subr.bf16.mxu0 0
        %2251 = vmatpush1.bf16.msra.mxu0 0
        %2252 = vmatprep.subr.bf16.mxu0 0
        %2253 = vmatpush1.bf16.msra.mxu0 0
        %2254 = vmatprep.mubr.bf16.mxu0 0
        %2255 = vmatmul.mubr.bf16.gmra.mrb[0].mxu0 %v2217
        %v2256 = vpop.f32.mrb[0].mxu0
        %v2257 = vadd.f32 0.0, %v2256
        %v2258 = vpop.f32.mrb[0].mxu0
        %v2259 = vadd.f32 0.0, %v2258
        %v2260 = vpop.f32.mrb[0].mxu0
        %v2261 = vadd.f32 0.0, %v2260
        %v2262 = vpop.f32.mrb[0].mxu0
        %v2263 = vadd.f32 0.0, %v2262
        %2264 = vmatprep.mubr.bf16.mxu0 0
        %2265 = vmatmul.mubr.bf16.gmra.mrb[0].mxu0 %v2220
        %v2266 = vpop.f32.mrb[0].mxu0
        %v2267 = vadd.f32 0.0, %v2266
        %v2268 = vpop.f32.mrb[0].mxu0
        %v2269 = vadd.f32 0.0, %v2268
        %v2270 = vpop.f32.mrb[0].mxu0
        %v2271 = vadd.f32 0.0, %v2270
        %v2272 = vpop.f32.mrb[0].mxu0
        %v2273 = vadd.f32 0.0, %v2272
        %2274 = vdwg.mxu0
        %v2275 = vadd.f32 %v2157, %v2257
        %v2276 = vadd.f32 %v2158, %v2259
        %v2277 = vadd.f32 %v2159, %v2261
        %v2278 = vadd.f32 %v2160, %v2263
        %v2279 = vadd.f32 %v2161, %v2267
        %v2280 = vadd.f32 %v2162, %v2269
        %v2281 = vadd.f32 %v2163, %v2271
        %v2282 = vadd.f32 %v2164, %v2273
        %2283 = vrot.lane.b32.xlu0 %v1458, 112
        %v2284 = vpop.permute.xlu0 %2283
        %2285 = vrot.lane.b32.xlu0 %v1460, 112
        %v2286 = vpop.permute.xlu0 %2285
        %2287 = vrot.lane.b32.xlu0 %v1462, 112
        %v2288 = vpop.permute.xlu0 %2287
        %2289 = vrot.lane.b32.xlu0 %v1464, 112
        %v2290 = vpop.permute.xlu0 %2289
        %2291 = vrot.lane.b32.xlu0 %v1459, 112
        %v2292 = vpop.permute.xlu0 %2291
        %2293 = vrot.lane.b32.xlu0 %v1461, 112
        %v2294 = vpop.permute.xlu0 %2293
        %2295 = vrot.lane.b32.xlu0 %v1463, 112
        %v2296 = vpop.permute.xlu0 %2295
        %2297 = vrot.lane.b32.xlu0 %v1465, 112
        %v2298 = vpop.permute.xlu0 %2297
        %v2299 = vsel %vm1218, %v2284, %v2292
        %v2300 = vsel %vm1218, %v2286, %v2294
        %v2301 = vsel %vm1218, %v2288, %v2296
        %v2302 = vsel %vm1218, %v2290, %v2298
        %v2303 = vsel %vm1218, %v2292, %v2284
        %v2304 = vsel %vm1218, %v2294, %v2286
        %v2305 = vsel %vm1218, %v2296, %v2288
        %v2306 = vsel %vm1218, %v2298, %v2290
        %v2307 = vmul.f32 %v2299, %v1228
        %v2308 = vmul.f32 %v2303, %v1229
        %v2309 = vmul.f32 %v2300, %v1230
        %v2310 = vmul.f32 %v2304, %v1231
        %v2311 = vmul.f32 %v2301, %v1232
        %v2312 = vmul.f32 %v2305, %v1233
        %v2313 = vmul.f32 %v2302, %v1234
        %v2314 = vmul.f32 %v2306, %v1235
        %v2315 = vpack.c.bf16 %v2309, %v2307
        %v2316 = vpack.c.bf16 %v2310, %v2308
        %v2317 = vpack.c.bf16 %v2313, %v2311
        %v2318 = vpack.c.bf16 %v2314, %v2312
        %s2319 = scalar_lea.vmem [#allocation7], 112
        %v2320 = vld [vmem:[%s2319] sm:$0xf]
        %v2321 = vld [vmem:[%s2319 + $0x4] sm:$0xf]
        %v2322 = vld [vmem:[%s2319 + $0x8] sm:$0xf]
        %v2323 = vld [vmem:[%s2319 + $0xc] sm:$0xf]
        %v2328 = vunpack.c.l.b16 %v2320
        %v2329 = vunpack.c.l.b16 %v2321
        %v2330 = vunpack.c.l.b16 %v2322
        %v2331 = vunpack.c.l.b16 %v2323
        %v2332 = vpack.c.b16 %v2329, %v2328
        %v2333 = vpack.c.b16 %v2331, %v2330
        %v2335 = vsel %vm408, %v2332, 0
        %v2338 = vsel %vm408, %v2333, 0
        %2340 = vmatprep.subr.bf16.mxu0 %v2316
        %2341 = vmatpush1.bf16.msra.mxu0 %v2315
        %2342 = vmatprep.subr.bf16.mxu0 %v2318
        %2343 = vmatpush1.bf16.msra.mxu0 %v2317
        %2344 = vmatprep.subr.bf16.mxu0 0
        %2345 = vmatpush1.bf16.msra.mxu0 0
        %2346 = vmatprep.subr.bf16.mxu0 0
        %2347 = vmatpush1.bf16.msra.mxu0 0
        %2348 = vmatprep.subr.bf16.mxu0 0
        %2349 = vmatpush1.bf16.msra.mxu0 0
        %2350 = vmatprep.subr.bf16.mxu0 0
        %2351 = vmatpush1.bf16.msra.mxu0 0
        %2352 = vmatprep.subr.bf16.mxu0 0
        %2353 = vmatpush1.bf16.msra.mxu0 0
        %2354 = vmatprep.subr.bf16.mxu0 0
        %2355 = vmatpush1.bf16.msra.mxu0 0
        %2356 = vmatprep.subr.bf16.mxu0 0
        %2357 = vmatpush1.bf16.msra.mxu0 0
        %2358 = vmatprep.subr.bf16.mxu0 0
        %2359 = vmatpush1.bf16.msra.mxu0 0
        %2360 = vmatprep.subr.bf16.mxu0 0
        %2361 = vmatpush1.bf16.msra.mxu0 0
        %2362 = vmatprep.subr.bf16.mxu0 0
        %2363 = vmatpush1.bf16.msra.mxu0 0
        %2364 = vmatprep.subr.bf16.mxu0 0
        %2365 = vmatpush1.bf16.msra.mxu0 0
        %2366 = vmatprep.subr.bf16.mxu0 0
        %2367 = vmatpush1.bf16.msra.mxu0 0
        %2368 = vmatprep.subr.bf16.mxu0 0
        %2369 = vmatpush1.bf16.msra.mxu0 0
        %2370 = vmatprep.subr.bf16.mxu0 0
        %2371 = vmatpush1.bf16.msra.mxu0 0
        %2372 = vmatprep.mubr.bf16.mxu0 0
        %2373 = vmatmul.mubr.bf16.gmra.mrb[0].mxu0 %v2335
        %v2374 = vpop.f32.mrb[0].mxu0
        %v2375 = vadd.f32 0.0, %v2374
        %v2376 = vpop.f32.mrb[0].mxu0
        %v2377 = vadd.f32 0.0, %v2376
        %v2378 = vpop.f32.mrb[0].mxu0
        %v2379 = vadd.f32 0.0, %v2378
        %v2380 = vpop.f32.mrb[0].mxu0
        %v2381 = vadd.f32 0.0, %v2380
        %2382 = vmatprep.mubr.bf16.mxu0 0
        %2383 = vmatmul.mubr.bf16.gmra.mrb[0].mxu0 %v2338
        %v2384 = vpop.f32.mrb[0].mxu0
        %v2385 = vadd.f32 0.0, %v2384
        %v2386 = vpop.f32.mrb[0].mxu0
        %v2387 = vadd.f32 0.0, %v2386
        %v2388 = vpop.f32.mrb[0].mxu0
        %v2389 = vadd.f32 0.0, %v2388
        %v2390 = vpop.f32.mrb[0].mxu0
        %v2391 = vadd.f32 0.0, %v2390
        %2392 = vdwg.mxu0
        %v2393 = vadd.f32 %v2275, %v2375
        %v2394 = vadd.f32 %v2276, %v2377
        %v2395 = vadd.f32 %v2277, %v2379
        %v2396 = vadd.f32 %v2278, %v2381
        %v2397 = vadd.f32 %v2279, %v2385
        %v2398 = vadd.f32 %v2280, %v2387
        %v2399 = vadd.f32 %v2281, %v2389
        %v2400 = vadd.f32 %v2282, %v2391
        %2401 = vrot.lane.b32.xlu0 %v1458, 111
        %v2402 = vpop.permute.xlu0 %2401
        %2403 = vrot.lane.b32.xlu0 %v1460, 111
        %v2404 = vpop.permute.xlu0 %2403
        %2405 = vrot.lane.b32.xlu0 %v1462, 111
        %v2406 = vpop.permute.xlu0 %2405
        %2407 = vrot.lane.b32.xlu0 %v1464, 111
        %v2408 = vpop.permute.xlu0 %2407
        %2409 = vrot.lane.b32.xlu0 %v1459, 111
        %v2410 = vpop.permute.xlu0 %2409
        %2411 = vrot.lane.b32.xlu0 %v1461, 111
        %v2412 = vpop.permute.xlu0 %2411
        %2413 = vrot.lane.b32.xlu0 %v1463, 111
        %v2414 = vpop.permute.xlu0 %2413
        %2415 = vrot.lane.b32.xlu0 %v1465, 111
        %v2416 = vpop.permute.xlu0 %2415
        %v2417 = vsel %vm1346, %v2402, %v2410
        %v2418 = vsel %vm1346, %v2404, %v2412
        %v2419 = vsel %vm1346, %v2406, %v2414
        %v2420 = vsel %vm1346, %v2408, %v2416
        %v2421 = vsel %vm1346, %v2410, %v2402
        %v2422 = vsel %vm1346, %v2412, %v2404
        %v2423 = vsel %vm1346, %v2414, %v2406
        %v2424 = vsel %vm1346, %v2416, %v2408
        %v2425 = vmul.f32 %v2417, %v1356
        %v2426 = vmul.f32 %v2421, %v1357
        %v2427 = vmul.f32 %v2418, %v1358
        %v2428 = vmul.f32 %v2422, %v1359
        %v2429 = vmul.f32 %v2419, %v1360
        %v2430 = vmul.f32 %v2423, %v1361
        %v2431 = vmul.f32 %v2420, %v1362
        %v2432 = vmul.f32 %v2424, %v1363
        %v2433 = vpack.c.bf16 %v2427, %v2425
        %v2434 = vpack.c.bf16 %v2428, %v2426
        %v2435 = vpack.c.bf16 %v2431, %v2429
        %v2436 = vpack.c.bf16 %v2432, %v2430
        %s2437 = scalar_lea.vmem [#allocation7], 128
        %v2438 = vld [vmem:[%s2437] sm:$0xf]
        %v2439 = vld [vmem:[%s2437 + $0x4] sm:$0xf]
        %v2440 = vld [vmem:[%s2437 + $0x8] sm:$0xf]
        %v2441 = vld [vmem:[%s2437 + $0xc] sm:$0xf]
        %v2446 = vunpack.c.l.b16 %v2438
        %v2447 = vunpack.c.l.b16 %v2439
        %v2448 = vunpack.c.l.b16 %v2440
        %v2449 = vunpack.c.l.b16 %v2441
        %v2450 = vpack.c.b16 %v2447, %v2446
        %v2451 = vpack.c.b16 %v2449, %v2448
        %v2453 = vsel %vm408, %v2450, 0
        %v2456 = vsel %vm408, %v2451, 0
        %2458 = vmatprep.subr.bf16.mxu0 %v2434
        %2459 = vmatpush1.bf16.msra.mxu0 %v2433
        %2460 = vmatprep.subr.bf16.mxu0 %v2436
        %2461 = vmatpush1.bf16.msra.mxu0 %v2435
        %2462 = vmatprep.subr.bf16.mxu0 0
        %2463 = vmatpush1.bf16.msra.mxu0 0
        %2464 = vmatprep.subr.bf16.mxu0 0
        %2465 = vmatpush1.bf16.msra.mxu0 0
        %2466 = vmatprep.subr.bf16.mxu0 0
        %2467 = vmatpush1.bf16.msra.mxu0 0
        %2468 = vmatprep.subr.bf16.mxu0 0
        %2469 = vmatpush1.bf16.msra.mxu0 0
        %2470 = vmatprep.subr.bf16.mxu0 0
        %2471 = vmatpush1.bf16.msra.mxu0 0
        %2472 = vmatprep.subr.bf16.mxu0 0
        %2473 = vmatpush1.bf16.msra.mxu0 0
        %2474 = vmatprep.subr.bf16.mxu0 0
        %2475 = vmatpush1.bf16.msra.mxu0 0
        %2476 = vmatprep.subr.bf16.mxu0 0
        %2477 = vmatpush1.bf16.msra.mxu0 0
        %2478 = vmatprep.subr.bf16.mxu0 0
        %2479 = vmatpush1.bf16.msra.mxu0 0
        %2480 = vmatprep.subr.bf16.mxu0 0
        %2481 = vmatpush1.bf16.msra.mxu0 0
        %2482 = vmatprep.subr.bf16.mxu0 0
        %2483 = vmatpush1.bf16.msra.mxu0 0
        %2484 = vmatprep.subr.bf16.mxu0 0
        %2485 = vmatpush1.bf16.msra.mxu0 0
        %2486 = vmatprep.subr.bf16.mxu0 0
        %2487 = vmatpush1.bf16.msra.mxu0 0
        %2488 = vmatprep.subr.bf16.mxu0 0
        %2489 = vmatpush1.bf16.msra.mxu0 0
        %2490 = vmatprep.mubr.bf16.mxu0 0
        %2491 = vmatmul.mubr.bf16.gmra.mrb[0].mxu0 %v2453
        %v2492 = vpop.f32.mrb[0].mxu0
        %v2493 = vadd.f32 0.0, %v2492
        %v2494 = vpop.f32.mrb[0].mxu0
        %v2495 = vadd.f32 0.0, %v2494
        %v2496 = vpop.f32.mrb[0].mxu0
        %v2497 = vadd.f32 0.0, %v2496
        %v2498 = vpop.f32.mrb[0].mxu0
        %v2499 = vadd.f32 0.0, %v2498
        %2500 = vmatprep.mubr.bf16.mxu0 0
        %2501 = vmatmul.mubr.bf16.gmra.mrb[0].mxu0 %v2456
        %v2502 = vpop.f32.mrb[0].mxu0
        %v2503 = vadd.f32 0.0, %v2502
        %v2504 = vpop.f32.mrb[0].mxu0
        %v2505 = vadd.f32 0.0, %v2504
        %v2506 = vpop.f32.mrb[0].mxu0
        %v2507 = vadd.f32 0.0, %v2506
        %v2508 = vpop.f32.mrb[0].mxu0
        %v2509 = vadd.f32 0.0, %v2508
        %2510 = vdwg.mxu0
        %v2511 = vadd.f32 %v2393, %v2493
        %v2512 = vadd.f32 %v2394, %v2495
        %v2513 = vadd.f32 %v2395, %v2497
        %v2514 = vadd.f32 %v2396, %v2499
        %v2515 = vadd.f32 %v2397, %v2503
        %v2516 = vadd.f32 %v2398, %v2505
        %v2517 = vadd.f32 %v2399, %v2507
        %v2518 = vadd.f32 %v2400, %v2509
        %v2519 = vadd.f32 %v315, %v2511
        %v2520 = vadd.f32 %v316, %v2512
        %v2521 = vadd.f32 %v317, %v2513
        %v2522 = vadd.f32 %v318, %v2514
        %v2523 = vadd.f32 %v319, %v2515
        %v2524 = vadd.f32 %v320, %v2516
        %v2525 = vadd.f32 %v321, %v2517
        %v2526 = vadd.f32 %v322, %v2518
        %2527 = vst [vmem:[%s313] sm:$0xff] %v2519
        %2528 = vst [vmem:[%s313 + $0x8] sm:$0xff] %v2520
        %2529 = vst [vmem:[%s313 + $0x10] sm:$0xff] %v2521
        %2530 = vst [vmem:[%s313 + $0x18] sm:$0xff] %v2522
        %2531 = vst [vmem:[%s313 + $0x20] sm:$0xff] %v2523
        %2532 = vst [vmem:[%s313 + $0x28] sm:$0xff] %v2524
        %2533 = vst [vmem:[%s313 + $0x30] sm:$0xff] %v2525
        %2534 = vst [vmem:[%s313 + $0x38] sm:$0xff] %v2526
        %s2535 = sand.u32 %s164, 1
        %s2536 = scalar_lea.sflag [#allocation4], %s2535
        %s2537 = sand.u32 %s164, 1
        %s2538 = smul.addr %s2537, 64
        %s2539 = scalar_lea.vmem [#allocation10], %s2538
        // Predicated region
        $region61: #{tpu_custom_call.1} parent=43 // pred_check
          %p2540 = pneg %p174
        $region62: #{tpu_custom_call.1} parent=43 // pred_check_branch
          %2542 = sbr.rel (%p2540) target = $region64
        $region63: #{tpu_custom_call.1} parent=43 // pred_region
          %s2544 = ssub.s32 1024, 1024
          %2545 = vsyncadd %s2536, %s2544
          %s2546 = smul.addr %s25, 8
          %s2547 = smul.addr %s2546, 128
          %s2548 = scalar_lea.hbm %s6, %s2547
          %s2549 = sshll.u32 %s2539, 4
          %s2550 = int_to_ptr.vmem [resolvable:$true] %s2549
          %2555 = dma.vmem_to_hbm [thread:$0]  %s2550, 1024, %s2548, %s2536, 256, 256, 16
        $region64: #{tpu_custom_call.1} parent=43 // pred_fallthru
          _
      $region44: #{tpu_custom_call.1} parent=5 // pred_fallthru
        _
      %p2556 = scmp.le.s32.totalorder 2, %s20
      // Predicated region
      $region65: #{tpu_custom_call.1} parent=5 // pred_check
        %p2557 = pneg %p2556
      $region66: #{tpu_custom_call.1} parent=5 // pred_check_branch
        %2559 = sbr.rel (%p2557) target = $region68
      $region67: #{tpu_custom_call.1} parent=5 // pred_region
        %s2560 = ssub.s32 %s20, 2
        // Predicated region
        $region69: #{tpu_custom_call.1} parent=67 // pred_check
          %p2561 = pneg %p180
        $region70: #{tpu_custom_call.1} parent=67 // pred_check_branch
          %2563 = sbr.rel (%p2561) target = $region72
        $region71: #{tpu_custom_call.1} parent=67 // pred_region
          %s2564 = sand.u32 %s165, 1
          %s2565 = scalar_lea.sflag [#allocation4], %s2564
          %s2566 = sand.u32 %s165, 1
          %s2567 = smul.addr %s2566, 64
          %s2568 = scalar_lea.vmem [#allocation10], %s2567
          %2569 = dma.done %s2565, 1024
        $region72: #{tpu_custom_call.1} parent=67 // pred_fallthru
          _
      $region68: #{tpu_custom_call.1} parent=5 // pred_fallthru
        _
    $region6: #{tpu_custom_call.1} parent=1 // loop_footer
      %s24 = sadd.s32 1, %s20
    $region7: #{tpu_custom_call.1} parent=1 // loop_footer_branch
      %19 = sbr.rel target = $region3
    $region8: #{tpu_custom_call.1} parent=1 // loop_exit
      _
    %2570 = vsyncpa [#allocation3], 1
    %s2571 = scalar_lea.sflag [#allocation3], 1
    %2572 = vsyncpa %s2571, 1
    %2573 = vsyncpa [#allocation6], 1
    %2574 = vsyncpa [#allocation9], 1
    %2575 = vsyncpa [#allocation4], 1
    %s2576 = scalar_lea.sflag [#allocation4], 1
    %2577 = vsyncpa %s2576, 1

</llo_original>
